<compile_context>
chip_gen: v7x
topology: tpu7x:2x2x1
jax: 0.10.0
libtpu: 0.0.40
codegen_flags: <defaults>
</compile_context>

<pallas_src>
import functools

import numpy as np

import jax
import jax.numpy as jnp
from jax import lax
from jax.experimental import pallas as pl
from jax.experimental.pallas import tpu as pltpu


# ----------------------------------------------------------------------------
# Fused forward-pass kernel (one grid step = one image)
# ----------------------------------------------------------------------------
def _fused_forward_kernel(x_ref, prow_ref, c_ref, b1_ref, d_ref, b2_ref,
                          wfc1_ref, bfc1_ref, wfc2_ref, bfc2_ref,
                          out_ref,
                          xp_ref, h1_ref, c2_ref, qmax_ref):
    f32 = jnp.float32
    dot = functools.partial(jnp.dot, preferred_element_type=f32)

    # Even/odd row de-interleave of the 28x28 image via a constant permutation
    # matmul: rows [0:14] = even input rows, rows [14:28] = odd input rows.
    xp_ref[...] = dot(prow_ref[...], x_ref[0])                        # (28, 28)

    # conv1 (5x5, 1->10) + 2x2 avg-pool + bias, folded into 6 banded matmuls.
    # Output rows = pooled height s (12), lanes = (pooled width t)*10 + oc.
    h1 = dot(xp_ref[0:12, :], c_ref[0]) + dot(xp_ref[14:26, :], c_ref[1])
    for m in (1, 2):
        h1 = h1 + dot(xp_ref[m:m + 12, :], c_ref[2 * m])
        h1 = h1 + dot(xp_ref[14 + m:26 + m, :], c_ref[2 * m + 1])
    h1_ref[...] = jnp.maximum(h1 + b1_ref[...], 0.0)                  # ReLU after pool

    # conv2 (5x5, 10->20) + bias: 5 banded matmuls. Output rows = height p (8),
    # lanes = q_phase*80 + q2*20 + oc2  (true width q = 2*q2 + q_phase).
    c2 = dot(h1_ref[0:8, :], d_ref[0])
    for di in (1, 2, 3, 4):
        c2 = c2 + dot(h1_ref[di:di + 8, :], d_ref[di])
    c2_ref[...] = c2 + b2_ref[...]                                    # (8, 160)

    # MaxPool2d(2): max over the q-phase lane halves, then adjacent row pairs.
    qmax_ref[...] = jnp.maximum(c2_ref[:, 0:80], c2_ref[:, 80:160])   # (8, 80)

    # fc1 (NCHW flatten order folded into wfc1) + bias -> ReLU -> fc2 + bias.
    acc = bfc1_ref[...]                                               # (1, 50)
    for p2 in range(4):
        row = jnp.maximum(qmax_ref[2 * p2:2 * p2 + 1, :],
                          qmax_ref[2 * p2 + 1:2 * p2 + 2, :])         # (1, 80)
        acc = acc + dot(row, wfc1_ref[p2])
    hidden = jnp.maximum(acc, 0.0)
    out_ref[0] = dot(hidden, wfc2_ref[...]) + bfc2_ref[...]           # (1, 10)


def mnist_usps_forward(params, x_nchw):
    n = x_nchw.shape[0]
    x = x_nchw.reshape(n, 28, 28)            # squeeze C=1 (free reshape)
    f32 = jnp.float32

    out = pl.pallas_call(
        _fused_forward_kernel,
        out_shape=jax.ShapeDtypeStruct((n, 1, 10), f32),
        grid=(n,),
        in_specs=[
            pl.BlockSpec((1, 28, 28), lambda i: (i, 0, 0)),       # image i
            pl.BlockSpec((28, 28), lambda i: (0, 0)),             # row permutation
            pl.BlockSpec((6, 28, 120), lambda i: (0, 0, 0)),      # conv1+pool mats
            pl.BlockSpec((1, 120), lambda i: (0, 0)),             # conv1 bias (tiled)
            pl.BlockSpec((5, 120, 160), lambda i: (0, 0, 0)),     # conv2 mats
            pl.BlockSpec((1, 160), lambda i: (0, 0)),             # conv2 bias (tiled)
            pl.BlockSpec((4, 80, 50), lambda i: (0, 0, 0)),       # fc1 weight blocks
            pl.BlockSpec((1, 50), lambda i: (0, 0)),              # fc1 bias
            pl.BlockSpec((50, 10), lambda i: (0, 0)),             # fc2 weight
            pl.BlockSpec((1, 10), lambda i: (0, 0)),              # fc2 bias
        ],
        out_specs=pl.BlockSpec((1, 1, 10), lambda i: (i, 0, 0)),
        scratch_shapes=[
            pltpu.VMEM((28, 28), f32),     # de-interleaved input rows
            pltpu.VMEM((12, 120), f32),    # pooled + ReLU conv1 activations
            pltpu.VMEM((8, 160), f32),     # conv2 activations (q-phase split)
            pltpu.VMEM((8, 80), f32),      # q-pooled conv2 activations
        ],
        compiler_params=pltpu.CompilerParams(
            dimension_semantics=("arbitrary",)),   # tiny: keep on one core
    )(x, params["prow"], params["c"], params["b1t"], params["d"],
      params["b2t"], params["wfc1"], params["bfc1"], params["wfc2"],
      params["bfc2"])
    return out.reshape(n, 10)


# ----------------------------------------------------------------------------
# Parameters: PyTorch-layout init + one-time host-side conversion to the
# kernel's GEMM-friendly constant matrices.
# ----------------------------------------------------------------------------
def init_params(key):
    def dense(k, shape, fan_in):
        return jax.random.normal(k, shape, jnp.float32) * (2.0 / fan_in) ** 0.5

    keys = jax.random.split(key, 8)
    return dict(
        conv1_w=dense(keys[0], (10, 1, 5, 5), 25),
        conv1_b=0.1 * jax.random.normal(keys[1], (10,), jnp.float32),
        conv2_w=dense(keys[2], (20, 10, 5, 5), 250),
        conv2_b=0.1 * jax.random.normal(keys[3], (20,), jnp.float32),
        fc1_w=dense(keys[4], (50, 320), 320),
        fc1_b=0.1 * jax.random.normal(keys[5], (50,), jnp.float32),
        fc2_w=dense(keys[6], (10, 50), 50),
        fc2_b=0.1 * jax.random.normal(keys[7], (10,), jnp.float32),
    )


def prepare_params(p):
    """One-time (outside jit) conversion of PyTorch layouts to kernel constants."""
    w1 = np.asarray(p["conv1_w"], np.float32)   # (10, 1, 5, 5)
    b1 = np.asarray(p["conv1_b"], np.float32)   # (10,)
    w2 = np.asarray(p["conv2_w"], np.float32)   # (20, 10, 5, 5)
    b2 = np.asarray(p["conv2_b"], np.float32)   # (20,)
    fw1 = np.asarray(p["fc1_w"], np.float32)    # (50, 320)
    fb1 = np.asarray(p["fc1_b"], np.float32)    # (50,)
    fw2 = np.asarray(p["fc2_w"], np.float32)    # (10, 50)
    fb2 = np.asarray(p["fc2_b"], np.float32)    # (10,)

    # Row de-interleave permutation: (Prow @ x)[0:14] = even rows, [14:28] = odd.
    prow = np.zeros((28, 28), np.float32)
    for t in range(14):
        prow[t, 2 * t] = 1.0
        prow[14 + t, 2 * t + 1] = 1.0

    # conv1 + 2x2 avg-pool folded: pooled[s, t*10+oc] =
    #   b1[oc] + sum_{e=0..5} x[2s+e, :] @ C[e][:, t*10+oc]
    g = np.zeros((6, 6, 10), np.float32)        # pre-averaged 6x6 kernel
    for u in range(6):
        for v in range(6):
            for a in (0, 1):
                for b in (0, 1):
                    du, dv = u - a, v - b
                    if 0 <= du < 5 and 0 <= dv < 5:
                        g[u, v] += 0.25 * w1[:, 0, du, dv]
    cmats = np.zeros((6, 28, 120), np.float32)
    for e in range(6):
        for t in range(12):
            for v in range(6):
                cmats[e, 2 * t + v, t * 10:(t + 1) * 10] = g[e, v]
    b1t = np.tile(b1, 12)[None, :]              # (1, 120)

    # conv2 folded into 5 banded matrices; output columns (q_phase, q2, oc2).
    dmats = np.zeros((5, 120, 160), np.float32)
    for di in range(5):
        for b in (0, 1):
            for q2 in range(4):
                q = 2 * q2 + b
                col = b * 80 + q2 * 20
                for dj in range(5):
                    t = q + dj
                    dmats[di, t * 10:(t + 1) * 10, col:col + 20] = w2[:, :, di, dj].T
    b2t = np.tile(b2, 8)[None, :]               # (1, 160)

    # fc1 with the PyTorch NCHW flatten order folded in, split per row-pair p2.
    wfc1 = np.zeros((4, 80, 50), np.float32)
    for p2 in range(4):
        for q2 in range(4):
            for oc2 in range(20):
                wfc1[p2, q2 * 20 + oc2, :] = fw1[:, oc2 * 16 + p2 * 4 + q2]

    return dict(
        prow=jnp.asarray(prow), c=jnp.asarray(cmats), b1t=jnp.asarray(b1t),
        d=jnp.asarray(dmats), b2t=jnp.asarray(b2t),
        wfc1=jnp.asarray(wfc1), bfc1=jnp.asarray(fb1[None, :]),
        wfc2=jnp.asarray(fw2.T.copy()), bfc2=jnp.asarray(fb2[None, :]),
    )


# ----------------------------------------------------------------------------
# Plain-XLA reference of the PyTorch module (for the correctness self-check)
# ----------------------------------------------------------------------------
def reference_forward(p, x_nchw):
    dn = ("NCHW", "OIHW", "NCHW")
    hi = lax.Precision.HIGHEST
    y1 = lax.conv_general_dilated(x_nchw, p["conv1_w"], (1, 1), "VALID",
                                  dimension_numbers=dn, precision=hi)
    y1 = y1 + p["conv1_b"][None, :, None, None]
    a1 = lax.reduce_window(y1, 0.0, lax.add, (1, 1, 2, 2), (1, 1, 2, 2),
                           "VALID") / 4.0
    h1 = jnp.maximum(a1, 0.0)
    y2 = lax.conv_general_dilated(h1, p["conv2_w"], (1, 1), "VALID",
                                  dimension_numbers=dn, precision=hi)
    y2 = y2 + p["conv2_b"][None, :, None, None]
    m2 = lax.reduce_window(y2, -jnp.inf, lax.max, (1, 1, 2, 2), (1, 1, 2, 2),
                           "VALID")
    feats = m2.reshape(x_nchw.shape[0], -1)
    h = jnp.maximum(
        jnp.dot(feats, p["fc1_w"].T, precision=hi) + p["fc1_b"], 0.0)
    return jnp.dot(h, p["fc2_w"].T, precision=hi) + p["fc2_b"]


if __name__ == "__main__":
    key = jax.random.PRNGKey(0)
    pkey, xkey = jax.random.split(key)
    raw_params = init_params(pkey)
    params = prepare_params(raw_params)

    # MNIST/USPS-style input: (N, 1, 28, 28), batch = 2.
    x = jax.random.normal(xkey, (2, 1, 28, 28), jnp.float32)

    logits = jax.block_until_ready(jax.jit(mnist_usps_forward)(params, x))

    assert logits.shape == (2, 10), logits.shape
    assert bool(jnp.all(jnp.isfinite(logits)))

    # Correctness check against the plain-XLA reference of the PyTorch module.
    ref = jax.jit(reference_forward)(raw_params, x)
    err = float(jnp.max(jnp.abs(logits - ref)))
    assert err < 2e-2, f"max abs error vs reference: {err}"

    print("KERNEL_OK")
</pallas_src>

<mosaic_0001>
module attributes {stable_mosaic.version = 11 : i64} {
  func.func @_fused_forward_kernel(%arg0: i32, %arg1: memref<1x28x28xf32, #tpu.memory_space<vmem>>, %arg2: memref<28x28xf32, #tpu.memory_space<vmem>>, %arg3: memref<6x28x120xf32, #tpu.memory_space<vmem>>, %arg4: memref<1x120xf32, #tpu.memory_space<vmem>>, %arg5: memref<5x120x160xf32, #tpu.memory_space<vmem>>, %arg6: memref<1x160xf32, #tpu.memory_space<vmem>>, %arg7: memref<4x80x50xf32, #tpu.memory_space<vmem>>, %arg8: memref<1x50xf32, #tpu.memory_space<vmem>>, %arg9: memref<50x10xf32, #tpu.memory_space<vmem>>, %arg10: memref<1x10xf32, #tpu.memory_space<vmem>>, %arg11: memref<1x1x10xf32, #tpu.memory_space<vmem>>, %arg12: memref<28x28xf32, #tpu.memory_space<vmem>>, %arg13: memref<12x120xf32, #tpu.memory_space<vmem>>, %arg14: memref<8x160xf32, #tpu.memory_space<vmem>>, %arg15: memref<8x80xf32, #tpu.memory_space<vmem>>) attributes {dimension_semantics = [#tpu.dimension_semantics<arbitrary>], iteration_bounds = array<i64: 2>, scalar_prefetch = 0 : i64, scratch_operands = 4 : i64, tpu.core_type = #tpu.core_type<tc>, window_params = [{transform_indices = @transform_0, window_bounds = array<i64: 1, 28, 28>}, {pipeline_mode = #tpu.pipeline_mode<synchronous>, transform_indices = @transform_1, window_bounds = array<i64: 28, 28>}, {pipeline_mode = #tpu.pipeline_mode<synchronous>, transform_indices = @transform_2, window_bounds = array<i64: 6, 28, 120>}, {pipeline_mode = #tpu.pipeline_mode<synchronous>, transform_indices = @transform_3, window_bounds = array<i64: 1, 120>}, {pipeline_mode = #tpu.pipeline_mode<synchronous>, transform_indices = @transform_4, window_bounds = array<i64: 5, 120, 160>}, {pipeline_mode = #tpu.pipeline_mode<synchronous>, transform_indices = @transform_5, window_bounds = array<i64: 1, 160>}, {pipeline_mode = #tpu.pipeline_mode<synchronous>, transform_indices = @transform_6, window_bounds = array<i64: 4, 80, 50>}, {pipeline_mode = #tpu.pipeline_mode<synchronous>, transform_indices = @transform_7, window_bounds = array<i64: 1, 50>}, {pipeline_mode = #tpu.pipeline_mode<synchronous>, transform_indices = @transform_8, window_bounds = array<i64: 50, 10>}, {pipeline_mode = #tpu.pipeline_mode<synchronous>, transform_indices = @transform_9, window_bounds = array<i64: 1, 10>}, {transform_indices = @transform_10, window_bounds = array<i64: 1, 1, 10>}]} {
    %c0 = arith.constant 0 : index
    %c0_0 = arith.constant 0 : index
    %0 = vector.load %arg2[%c0, %c0_0] : memref<28x28xf32, #tpu.memory_space<vmem>>, vector<28x28xf32>
    %c0_1 = arith.constant 0 : index
    %c0_2 = arith.constant 0 : index
    %c0_3 = arith.constant 0 : index
    %1 = vector.load %arg1[%c0_1, %c0_2, %c0_3] : memref<1x28x28xf32, #tpu.memory_space<vmem>>, vector<1x28x28xf32>
    %2 = vector.shape_cast %1 : vector<1x28x28xf32> to vector<28x28xf32>
    %cst = arith.constant dense<0.000000e+00> : vector<28x28xf32>
    %3 = tpu.matmul %0, %2, %cst {dimension_numbers = #tpu.dot_dimension_numbers<[1], [0], [0], [1], [0, 0, 1, 1], [], []>} : vector<28x28xf32>, vector<28x28xf32>, vector<28x28xf32> -> vector<28x28xf32>
    %c0_4 = arith.constant 0 : index
    %c0_5 = arith.constant 0 : index
    %4 = vector.load %arg12[%c0_4, %c0_5] : memref<28x28xf32, #tpu.memory_space<vmem>>, vector<28x28xf32>
    tpu.vector_store %arg12[%c0_4, %c0_5], %3 {strides = array<i32>} : memref<28x28xf32, #tpu.memory_space<vmem>>, vector<28x28xf32>,
    %c0_6 = arith.constant 0 : index
    %c0_7 = arith.constant 0 : index
    %5 = vector.load %arg12[%c0_6, %c0_7] : memref<28x28xf32, #tpu.memory_space<vmem>>, vector<12x28xf32>
    %c0_8 = arith.constant 0 : index
    %c0_9 = arith.constant 0 : index
    %c0_10 = arith.constant 0 : index
    %6 = vector.load %arg3[%c0_8, %c0_9, %c0_10] : memref<6x28x120xf32, #tpu.memory_space<vmem>>, vector<1x28x120xf32>
    %7 = vector.shape_cast %6 : vector<1x28x120xf32> to vector<28x120xf32>
    %cst_11 = arith.constant dense<0.000000e+00> : vector<12x120xf32>
    %8 = tpu.matmul %5, %7, %cst_11 {dimension_numbers = #tpu.dot_dimension_numbers<[1], [0], [0], [1], [0, 0, 1, 1], [], []>} : vector<12x28xf32>, vector<28x120xf32>, vector<12x120xf32> -> vector<12x120xf32>
    %c14 = arith.constant 14 : index
    %c0_12 = arith.constant 0 : index
    %9 = vector.load %arg12[%c14, %c0_12] : memref<28x28xf32, #tpu.memory_space<vmem>>, vector<12x28xf32>
    %c1 = arith.constant 1 : index
    %c0_13 = arith.constant 0 : index
    %c0_14 = arith.constant 0 : index
    %10 = vector.load %arg3[%c1, %c0_13, %c0_14] : memref<6x28x120xf32, #tpu.memory_space<vmem>>, vector<1x28x120xf32>
    %11 = vector.shape_cast %10 : vector<1x28x120xf32> to vector<28x120xf32>
    %cst_15 = arith.constant dense<0.000000e+00> : vector<12x120xf32>
    %12 = tpu.matmul %9, %11, %cst_15 {dimension_numbers = #tpu.dot_dimension_numbers<[1], [0], [0], [1], [0, 0, 1, 1], [], []>} : vector<12x28xf32>, vector<28x120xf32>, vector<12x120xf32> -> vector<12x120xf32>
    %13 = arith.addf %8, %12 : vector<12x120xf32>
    %c1_16 = arith.constant 1 : index
    %c0_17 = arith.constant 0 : index
    %14 = vector.load %arg12[%c1_16, %c0_17] : memref<28x28xf32, #tpu.memory_space<vmem>>, vector<12x28xf32>
    %c2 = arith.constant 2 : index
    %c0_18 = arith.constant 0 : index
    %c0_19 = arith.constant 0 : index
    %15 = vector.load %arg3[%c2, %c0_18, %c0_19] : memref<6x28x120xf32, #tpu.memory_space<vmem>>, vector<1x28x120xf32>
    %16 = vector.shape_cast %15 : vector<1x28x120xf32> to vector<28x120xf32>
    %cst_20 = arith.constant dense<0.000000e+00> : vector<12x120xf32>
    %17 = tpu.matmul %14, %16, %cst_20 {dimension_numbers = #tpu.dot_dimension_numbers<[1], [0], [0], [1], [0, 0, 1, 1], [], []>} : vector<12x28xf32>, vector<28x120xf32>, vector<12x120xf32> -> vector<12x120xf32>
    %18 = arith.addf %13, %17 : vector<12x120xf32>
    %c15 = arith.constant 15 : index
    %c0_21 = arith.constant 0 : index
    %19 = vector.load %arg12[%c15, %c0_21] : memref<28x28xf32, #tpu.memory_space<vmem>>, vector<12x28xf32>
    %c3 = arith.constant 3 : index
    %c0_22 = arith.constant 0 : index
    %c0_23 = arith.constant 0 : index
    %20 = vector.load %arg3[%c3, %c0_22, %c0_23] : memref<6x28x120xf32, #tpu.memory_space<vmem>>, vector<1x28x120xf32>
    %21 = vector.shape_cast %20 : vector<1x28x120xf32> to vector<28x120xf32>
    %cst_24 = arith.constant dense<0.000000e+00> : vector<12x120xf32>
    %22 = tpu.matmul %19, %21, %cst_24 {dimension_numbers = #tpu.dot_dimension_numbers<[1], [0], [0], [1], [0, 0, 1, 1], [], []>} : vector<12x28xf32>, vector<28x120xf32>, vector<12x120xf32> -> vector<12x120xf32>
    %23 = arith.addf %18, %22 : vector<12x120xf32>
    %c2_25 = arith.constant 2 : index
    %c0_26 = arith.constant 0 : index
    %24 = vector.load %arg12[%c2_25, %c0_26] : memref<28x28xf32, #tpu.memory_space<vmem>>, vector<12x28xf32>
    %c4 = arith.constant 4 : index
    %c0_27 = arith.constant 0 : index
    %c0_28 = arith.constant 0 : index
    %25 = vector.load %arg3[%c4, %c0_27, %c0_28] : memref<6x28x120xf32, #tpu.memory_space<vmem>>, vector<1x28x120xf32>
    %26 = vector.shape_cast %25 : vector<1x28x120xf32> to vector<28x120xf32>
    %cst_29 = arith.constant dense<0.000000e+00> : vector<12x120xf32>
    %27 = tpu.matmul %24, %26, %cst_29 {dimension_numbers = #tpu.dot_dimension_numbers<[1], [0], [0], [1], [0, 0, 1, 1], [], []>} : vector<12x28xf32>, vector<28x120xf32>, vector<12x120xf32> -> vector<12x120xf32>
    %28 = arith.addf %23, %27 : vector<12x120xf32>
    %c16 = arith.constant 16 : index
    %c0_30 = arith.constant 0 : index
    %29 = vector.load %arg12[%c16, %c0_30] : memref<28x28xf32, #tpu.memory_space<vmem>>, vector<12x28xf32>
    %c5 = arith.constant 5 : index
    %c0_31 = arith.constant 0 : index
    %c0_32 = arith.constant 0 : index
    %30 = vector.load %arg3[%c5, %c0_31, %c0_32] : memref<6x28x120xf32, #tpu.memory_space<vmem>>, vector<1x28x120xf32>
    %31 = vector.shape_cast %30 : vector<1x28x120xf32> to vector<28x120xf32>
    %cst_33 = arith.constant dense<0.000000e+00> : vector<12x120xf32>
    %32 = tpu.matmul %29, %31, %cst_33 {dimension_numbers = #tpu.dot_dimension_numbers<[1], [0], [0], [1], [0, 0, 1, 1], [], []>} : vector<12x28xf32>, vector<28x120xf32>, vector<12x120xf32> -> vector<12x120xf32>
    %33 = arith.addf %28, %32 : vector<12x120xf32>
    %c0_34 = arith.constant 0 : index
    %c0_35 = arith.constant 0 : index
    %34 = vector.load %arg4[%c0_34, %c0_35] : memref<1x120xf32, #tpu.memory_space<vmem>>, vector<1x120xf32>
    %35 = vector.broadcast %34 : vector<1x120xf32> to vector<12x120xf32>
    %36 = arith.addf %33, %35 : vector<12x120xf32>
    %cst_36 = arith.constant 0.000000e+00 : f32
    %37 = vector.broadcast %cst_36 : f32 to vector<12x120xf32>
    %38 = arith.maximumf %36, %37 : vector<12x120xf32>
    %c0_37 = arith.constant 0 : index
    %c0_38 = arith.constant 0 : index
    %39 = vector.load %arg13[%c0_37, %c0_38] : memref<12x120xf32, #tpu.memory_space<vmem>>, vector<12x120xf32>
    tpu.vector_store %arg13[%c0_37, %c0_38], %38 {strides = array<i32>} : memref<12x120xf32, #tpu.memory_space<vmem>>, vector<12x120xf32>,
    %c0_39 = arith.constant 0 : index
    %c0_40 = arith.constant 0 : index
    %40 = vector.load %arg13[%c0_39, %c0_40] : memref<12x120xf32, #tpu.memory_space<vmem>>, vector<8x120xf32>
    %c0_41 = arith.constant 0 : index
    %c0_42 = arith.constant 0 : index
    %c0_43 = arith.constant 0 : index
    %41 = vector.load %arg5[%c0_41, %c0_42, %c0_43] : memref<5x120x160xf32, #tpu.memory_space<vmem>>, vector<1x120x160xf32>
    %42 = vector.shape_cast %41 : vector<1x120x160xf32> to vector<120x160xf32>
    %cst_44 = arith.constant dense<0.000000e+00> : vector<8x160xf32>
    %43 = tpu.matmul %40, %42, %cst_44 {dimension_numbers = #tpu.dot_dimension_numbers<[1], [0], [0], [1], [0, 0, 1, 1], [], []>} : vector<8x120xf32>, vector<120x160xf32>, vector<8x160xf32> -> vector<8x160xf32>
    %c1_45 = arith.constant 1 : index
    %c0_46 = arith.constant 0 : index
    %44 = vector.load %arg13[%c1_45, %c0_46] : memref<12x120xf32, #tpu.memory_space<vmem>>, vector<8x120xf32>
    %c1_47 = arith.constant 1 : index
    %c0_48 = arith.constant 0 : index
    %c0_49 = arith.constant 0 : index
    %45 = vector.load %arg5[%c1_47, %c0_48, %c0_49] : memref<5x120x160xf32, #tpu.memory_space<vmem>>, vector<1x120x160xf32>
    %46 = vector.shape_cast %45 : vector<1x120x160xf32> to vector<120x160xf32>
    %cst_50 = arith.constant dense<0.000000e+00> : vector<8x160xf32>
    %47 = tpu.matmul %44, %46, %cst_50 {dimension_numbers = #tpu.dot_dimension_numbers<[1], [0], [0], [1], [0, 0, 1, 1], [], []>} : vector<8x120xf32>, vector<120x160xf32>, vector<8x160xf32> -> vector<8x160xf32>
    %48 = arith.addf %43, %47 : vector<8x160xf32>
    %c2_51 = arith.constant 2 : index
    %c0_52 = arith.constant 0 : index
    %49 = vector.load %arg13[%c2_51, %c0_52] : memref<12x120xf32, #tpu.memory_space<vmem>>, vector<8x120xf32>
    %c2_53 = arith.constant 2 : index
    %c0_54 = arith.constant 0 : index
    %c0_55 = arith.constant 0 : index
    %50 = vector.load %arg5[%c2_53, %c0_54, %c0_55] : memref<5x120x160xf32, #tpu.memory_space<vmem>>, vector<1x120x160xf32>
    %51 = vector.shape_cast %50 : vector<1x120x160xf32> to vector<120x160xf32>
    %cst_56 = arith.constant dense<0.000000e+00> : vector<8x160xf32>
    %52 = tpu.matmul %49, %51, %cst_56 {dimension_numbers = #tpu.dot_dimension_numbers<[1], [0], [0], [1], [0, 0, 1, 1], [], []>} : vector<8x120xf32>, vector<120x160xf32>, vector<8x160xf32> -> vector<8x160xf32>
    %53 = arith.addf %48, %52 : vector<8x160xf32>
    %c3_57 = arith.constant 3 : index
    %c0_58 = arith.constant 0 : index
    %54 = vector.load %arg13[%c3_57, %c0_58] : memref<12x120xf32, #tpu.memory_space<vmem>>, vector<8x120xf32>
    %c3_59 = arith.constant 3 : index
    %c0_60 = arith.constant 0 : index
    %c0_61 = arith.constant 0 : index
    %55 = vector.load %arg5[%c3_59, %c0_60, %c0_61] : memref<5x120x160xf32, #tpu.memory_space<vmem>>, vector<1x120x160xf32>
    %56 = vector.shape_cast %55 : vector<1x120x160xf32> to vector<120x160xf32>
    %cst_62 = arith.constant dense<0.000000e+00> : vector<8x160xf32>
    %57 = tpu.matmul %54, %56, %cst_62 {dimension_numbers = #tpu.dot_dimension_numbers<[1], [0], [0], [1], [0, 0, 1, 1], [], []>} : vector<8x120xf32>, vector<120x160xf32>, vector<8x160xf32> -> vector<8x160xf32>
    %58 = arith.addf %53, %57 : vector<8x160xf32>
    %c4_63 = arith.constant 4 : index
    %c0_64 = arith.constant 0 : index
    %59 = vector.load %arg13[%c4_63, %c0_64] : memref<12x120xf32, #tpu.memory_space<vmem>>, vector<8x120xf32>
    %c4_65 = arith.constant 4 : index
    %c0_66 = arith.constant 0 : index
    %c0_67 = arith.constant 0 : index
    %60 = vector.load %arg5[%c4_65, %c0_66, %c0_67] : memref<5x120x160xf32, #tpu.memory_space<vmem>>, vector<1x120x160xf32>
    %61 = vector.shape_cast %60 : vector<1x120x160xf32> to vector<120x160xf32>
    %cst_68 = arith.constant dense<0.000000e+00> : vector<8x160xf32>
    %62 = tpu.matmul %59, %61, %cst_68 {dimension_numbers = #tpu.dot_dimension_numbers<[1], [0], [0], [1], [0, 0, 1, 1], [], []>} : vector<8x120xf32>, vector<120x160xf32>, vector<8x160xf32> -> vector<8x160xf32>
    %63 = arith.addf %58, %62 : vector<8x160xf32>
    %c0_69 = arith.constant 0 : index
    %c0_70 = arith.constant 0 : index
    %64 = vector.load %arg6[%c0_69, %c0_70] : memref<1x160xf32, #tpu.memory_space<vmem>>, vector<1x160xf32>
    %65 = vector.broadcast %64 : vector<1x160xf32> to vector<8x160xf32>
    %66 = arith.addf %63, %65 : vector<8x160xf32>
    %c0_71 = arith.constant 0 : index
    %c0_72 = arith.constant 0 : index
    %67 = vector.load %arg14[%c0_71, %c0_72] : memref<8x160xf32, #tpu.memory_space<vmem>>, vector<8x160xf32>
    tpu.vector_store %arg14[%c0_71, %c0_72], %66 {strides = array<i32>} : memref<8x160xf32, #tpu.memory_space<vmem>>, vector<8x160xf32>,
    %c0_73 = arith.constant 0 : index
    %c0_74 = arith.constant 0 : index
    %68 = vector.load %arg14[%c0_73, %c0_74] : memref<8x160xf32, #tpu.memory_space<vmem>>, vector<8x80xf32>
    %c0_75 = arith.constant 0 : index
    %c80 = arith.constant 80 : index
    %69 = vector.load %arg14[%c0_75, %c80] : memref<8x160xf32, #tpu.memory_space<vmem>>, vector<8x80xf32>
    %70 = arith.maximumf %68, %69 : vector<8x80xf32>
    %c0_76 = arith.constant 0 : index
    %c0_77 = arith.constant 0 : index
    %71 = vector.load %arg15[%c0_76, %c0_77] : memref<8x80xf32, #tpu.memory_space<vmem>>, vector<8x80xf32>
    tpu.vector_store %arg15[%c0_76, %c0_77], %70 {strides = array<i32>} : memref<8x80xf32, #tpu.memory_space<vmem>>, vector<8x80xf32>,
    %c0_78 = arith.constant 0 : index
    %c0_79 = arith.constant 0 : index
    %72 = vector.load %arg8[%c0_78, %c0_79] : memref<1x50xf32, #tpu.memory_space<vmem>>, vector<1x50xf32>
    %c0_80 = arith.constant 0 : index
    %c0_81 = arith.constant 0 : index
    %73 = vector.load %arg15[%c0_80, %c0_81] : memref<8x80xf32, #tpu.memory_space<vmem>>, vector<1x80xf32>
    %c1_82 = arith.constant 1 : index
    %c0_83 = arith.constant 0 : index
    %74 = vector.load %arg15[%c1_82, %c0_83] : memref<8x80xf32, #tpu.memory_space<vmem>>, vector<1x80xf32>
    %75 = arith.maximumf %73, %74 : vector<1x80xf32>
    %c0_84 = arith.constant 0 : index
    %c0_85 = arith.constant 0 : index
    %c0_86 = arith.constant 0 : index
    %76 = vector.load %arg7[%c0_84, %c0_85, %c0_86] : memref<4x80x50xf32, #tpu.memory_space<vmem>>, vector<1x80x50xf32>
    %77 = vector.shape_cast %76 : vector<1x80x50xf32> to vector<80x50xf32>
    %cst_87 = arith.constant dense<0.000000e+00> : vector<1x50xf32>
    %78 = tpu.matmul %75, %77, %cst_87 {dimension_numbers = #tpu.dot_dimension_numbers<[1], [0], [0], [1], [0, 0, 1, 1], [], []>} : vector<1x80xf32>, vector<80x50xf32>, vector<1x50xf32> -> vector<1x50xf32>
    %79 = arith.addf %72, %78 : vector<1x50xf32>
    %c2_88 = arith.constant 2 : index
    %c0_89 = arith.constant 0 : index
    %80 = vector.load %arg15[%c2_88, %c0_89] : memref<8x80xf32, #tpu.memory_space<vmem>>, vector<1x80xf32>
    %c3_90 = arith.constant 3 : index
    %c0_91 = arith.constant 0 : index
    %81 = vector.load %arg15[%c3_90, %c0_91] : memref<8x80xf32, #tpu.memory_space<vmem>>, vector<1x80xf32>
    %82 = arith.maximumf %80, %81 : vector<1x80xf32>
    %c1_92 = arith.constant 1 : index
    %c0_93 = arith.constant 0 : index
    %c0_94 = arith.constant 0 : index
    %83 = vector.load %arg7[%c1_92, %c0_93, %c0_94] : memref<4x80x50xf32, #tpu.memory_space<vmem>>, vector<1x80x50xf32>
    %84 = vector.shape_cast %83 : vector<1x80x50xf32> to vector<80x50xf32>
    %cst_95 = arith.constant dense<0.000000e+00> : vector<1x50xf32>
    %85 = tpu.matmul %82, %84, %cst_95 {dimension_numbers = #tpu.dot_dimension_numbers<[1], [0], [0], [1], [0, 0, 1, 1], [], []>} : vector<1x80xf32>, vector<80x50xf32>, vector<1x50xf32> -> vector<1x50xf32>
    %86 = arith.addf %79, %85 : vector<1x50xf32>
    %c4_96 = arith.constant 4 : index
    %c0_97 = arith.constant 0 : index
    %87 = vector.load %arg15[%c4_96, %c0_97] : memref<8x80xf32, #tpu.memory_space<vmem>>, vector<1x80xf32>
    %c5_98 = arith.constant 5 : index
    %c0_99 = arith.constant 0 : index
    %88 = vector.load %arg15[%c5_98, %c0_99] : memref<8x80xf32, #tpu.memory_space<vmem>>, vector<1x80xf32>
    %89 = arith.maximumf %87, %88 : vector<1x80xf32>
    %c2_100 = arith.constant 2 : index
    %c0_101 = arith.constant 0 : index
    %c0_102 = arith.constant 0 : index
    %90 = vector.load %arg7[%c2_100, %c0_101, %c0_102] : memref<4x80x50xf32, #tpu.memory_space<vmem>>, vector<1x80x50xf32>
    %91 = vector.shape_cast %90 : vector<1x80x50xf32> to vector<80x50xf32>
    %cst_103 = arith.constant dense<0.000000e+00> : vector<1x50xf32>
    %92 = tpu.matmul %89, %91, %cst_103 {dimension_numbers = #tpu.dot_dimension_numbers<[1], [0], [0], [1], [0, 0, 1, 1], [], []>} : vector<1x80xf32>, vector<80x50xf32>, vector<1x50xf32> -> vector<1x50xf32>
    %93 = arith.addf %86, %92 : vector<1x50xf32>
    %c6 = arith.constant 6 : index
    %c0_104 = arith.constant 0 : index
    %94 = vector.load %arg15[%c6, %c0_104] : memref<8x80xf32, #tpu.memory_space<vmem>>, vector<1x80xf32>
    %c7 = arith.constant 7 : index
    %c0_105 = arith.constant 0 : index
    %95 = vector.load %arg15[%c7, %c0_105] : memref<8x80xf32, #tpu.memory_space<vmem>>, vector<1x80xf32>
    %96 = arith.maximumf %94, %95 : vector<1x80xf32>
    %c3_106 = arith.constant 3 : index
    %c0_107 = arith.constant 0 : index
    %c0_108 = arith.constant 0 : index
    %97 = vector.load %arg7[%c3_106, %c0_107, %c0_108] : memref<4x80x50xf32, #tpu.memory_space<vmem>>, vector<1x80x50xf32>
    %98 = vector.shape_cast %97 : vector<1x80x50xf32> to vector<80x50xf32>
    %cst_109 = arith.constant dense<0.000000e+00> : vector<1x50xf32>
    %99 = tpu.matmul %96, %98, %cst_109 {dimension_numbers = #tpu.dot_dimension_numbers<[1], [0], [0], [1], [0, 0, 1, 1], [], []>} : vector<1x80xf32>, vector<80x50xf32>, vector<1x50xf32> -> vector<1x50xf32>
    %100 = arith.addf %93, %99 : vector<1x50xf32>
    %cst_110 = arith.constant 0.000000e+00 : f32
    %101 = vector.broadcast %cst_110 : f32 to vector<1x50xf32>
    %102 = arith.maximumf %100, %101 : vector<1x50xf32>
    %c0_111 = arith.constant 0 : index
    %c0_112 = arith.constant 0 : index
    %103 = vector.load %arg9[%c0_111, %c0_112] : memref<50x10xf32, #tpu.memory_space<vmem>>, vector<50x10xf32>
    %cst_113 = arith.constant dense<0.000000e+00> : vector<1x10xf32>
    %104 = tpu.matmul %102, %103, %cst_113 {dimension_numbers = #tpu.dot_dimension_numbers<[1], [0], [0], [1], [0, 0, 1, 1], [], []>} : vector<1x50xf32>, vector<50x10xf32>, vector<1x10xf32> -> vector<1x10xf32>
    %c0_114 = arith.constant 0 : index
    %c0_115 = arith.constant 0 : index
    %105 = vector.load %arg10[%c0_114, %c0_115] : memref<1x10xf32, #tpu.memory_space<vmem>>, vector<1x10xf32>
    %106 = arith.addf %104, %105 : vector<1x10xf32>
    %c0_116 = arith.constant 0 : index
    %c0_117 = arith.constant 0 : index
    %c0_118 = arith.constant 0 : index
    %107 = vector.load %arg11[%c0_116, %c0_117, %c0_118] : memref<1x1x10xf32, #tpu.memory_space<vmem>>, vector<1x1x10xf32>
    %108 = vector.shape_cast %107 : vector<1x1x10xf32> to vector<1x10xf32>
    %109 = vector.shape_cast %106 : vector<1x10xf32> to vector<1x1x10xf32>
    tpu.vector_store %arg11[%c0_116, %c0_117, %c0_118], %109 {strides = array<i32>} : memref<1x1x10xf32, #tpu.memory_space<vmem>>, vector<1x1x10xf32>,
    return
  }
  func.func @transform_0(%arg0: i32) -> (i32, i32, i32) {
    %c0_i32 = arith.constant 0 : i32
    %c0_i32_0 = arith.constant 0 : i32
    %c0_i32_1 = arith.constant 0 : i32
    return %arg0, %c0_i32, %c0_i32_0 : i32, i32, i32
  }
  func.func @transform_1(%arg0: i32) -> (i32, i32) {
    %c0_i32 = arith.constant 0 : i32
    %c0_i32_0 = arith.constant 0 : i32
    %c0_i32_1 = arith.constant 0 : i32
    return %c0_i32, %c0_i32_0 : i32, i32
  }
  func.func @transform_2(%arg0: i32) -> (i32, i32, i32) {
    %c0_i32 = arith.constant 0 : i32
    %c0_i32_0 = arith.constant 0 : i32
    %c0_i32_1 = arith.constant 0 : i32
    %c0_i32_2 = arith.constant 0 : i32
    return %c0_i32, %c0_i32_0, %c0_i32_1 : i32, i32, i32
  }
  func.func @transform_3(%arg0: i32) -> (i32, i32) {
    %c0_i32 = arith.constant 0 : i32
    %c0_i32_0 = arith.constant 0 : i32
    %c0_i32_1 = arith.constant 0 : i32
    return %c0_i32, %c0_i32_0 : i32, i32
  }
  func.func @transform_4(%arg0: i32) -> (i32, i32, i32) {
    %c0_i32 = arith.constant 0 : i32
    %c0_i32_0 = arith.constant 0 : i32
    %c0_i32_1 = arith.constant 0 : i32
    %c0_i32_2 = arith.constant 0 : i32
    return %c0_i32, %c0_i32_0, %c0_i32_1 : i32, i32, i32
  }
  func.func @transform_5(%arg0: i32) -> (i32, i32) {
    %c0_i32 = arith.constant 0 : i32
    %c0_i32_0 = arith.constant 0 : i32
    %c0_i32_1 = arith.constant 0 : i32
    return %c0_i32, %c0_i32_0 : i32, i32
  }
  func.func @transform_6(%arg0: i32) -> (i32, i32, i32) {
    %c0_i32 = arith.constant 0 : i32
    %c0_i32_0 = arith.constant 0 : i32
    %c0_i32_1 = arith.constant 0 : i32
    %c0_i32_2 = arith.constant 0 : i32
    return %c0_i32, %c0_i32_0, %c0_i32_1 : i32, i32, i32
  }
  func.func @transform_7(%arg0: i32) -> (i32, i32) {
    %c0_i32 = arith.constant 0 : i32
    %c0_i32_0 = arith.constant 0 : i32
    %c0_i32_1 = arith.constant 0 : i32
    return %c0_i32, %c0_i32_0 : i32, i32
  }
  func.func @transform_8(%arg0: i32) -> (i32, i32) {
    %c0_i32 = arith.constant 0 : i32
    %c0_i32_0 = arith.constant 0 : i32
    %c0_i32_1 = arith.constant 0 : i32
    return %c0_i32, %c0_i32_0 : i32, i32
  }
  func.func @transform_9(%arg0: i32) -> (i32, i32) {
    %c0_i32 = arith.constant 0 : i32
    %c0_i32_0 = arith.constant 0 : i32
    %c0_i32_1 = arith.constant 0 : i32
    return %c0_i32, %c0_i32_0 : i32, i32
  }
  func.func @transform_10(%arg0: i32) -> (i32, i32, i32) {
    %c0_i32 = arith.constant 0 : i32
    %c0_i32_0 = arith.constant 0 : i32
    %c0_i32_1 = arith.constant 0 : i32
    return %arg0, %c0_i32, %c0_i32_0 : i32, i32, i32
  }
}

</mosaic_0001>

<llo_original>
// kernel: mnist_usps_forward.1
$region0: #{mnist_usps_forward.1}
  #allocation0 [shape = 'u32[]', space=smem, size = 0x4, offset = 0x4, fixed_abs, tag = 'smem constant byte address 0x4 - core index']
  #allocation1 [shape = 'u32[144,128]{1,0:T(1,128)}', space=vmem, size = 0x12000, scoped, tag = 'internal scratch']
  #allocation2 [shape = 'f32[28,28]{1,0:T(8,128)}', space=vmem, size = 0x4000, scoped, tag = 'scratch operand']
  #allocation3 [shape = 'f32[12,120]{1,0:T(8,128)}', space=vmem, size = 0x2000, scoped, tag = 'scratch operand']
  #allocation4 [shape = 'f32[8,160]{1,0:T(8,128)}', space=vmem, size = 0x2000, scoped, tag = 'scratch operand']
  #allocation5 [shape = 'f32[8,80]{1,0:T(8,128)}', space=vmem, size = 0x1000, scoped, tag = 'scratch operand']
  %s0 = inlined_call_operand.vmem [shape: f32[2,28,28], index: 0, kind: input, shape index: {}]
  %s1 = inlined_call_operand.vmem [shape: f32[28,28], index: 1, kind: input, shape index: {}]
  %s2 = inlined_call_operand.vmem [shape: f32[6,28,120], index: 2, kind: input, shape index: {}]
  %s3 = inlined_call_operand.vmem [shape: f32[1,120], index: 3, kind: input, shape index: {}]
  %s4 = inlined_call_operand.vmem [shape: f32[5,120,160], index: 4, kind: input, shape index: {}]
  %s5 = inlined_call_operand.vmem [shape: f32[1,160], index: 5, kind: input, shape index: {}]
  %s6 = inlined_call_operand.vmem [shape: f32[4,80,50], index: 6, kind: input, shape index: {}]
  %s7 = inlined_call_operand.vmem [shape: f32[1,50], index: 7, kind: input, shape index: {}]
  %s8 = inlined_call_operand.vmem [shape: f32[50,10], index: 8, kind: input, shape index: {}]
  %s9 = inlined_call_operand.vmem [shape: f32[1,10], index: 9, kind: input, shape index: {}]
  %s10 = inlined_call_operand.hbm [shape: f32[2,1,10], index: 10, kind: output, shape index: {}]
  %s11 = sld [smem:[#allocation0]]
  $region73: #{mnist_usps_forward.1} parent=0
    _
  %s13 = ssub.s32 1, %s11
  %s14 = scalar_select 0, %s13, %s11
  $region1: #{mnist_usps_forward.1} parent=0
    #allocation6 [shape = 'u8[1024]{0}', space=vmem, size = 0x400, scoped, tag = 'output window, operand 0']
    #allocation7 [shape = 's32[2]{0}', space=sflag, size = 0x8, scoped, tag = 'scoped memory for mnist_usps_forward.1']
    %15 = vsyncpa [#allocation7], 0
    %s16 = scalar_lea.sflag [#allocation7], 1
    %17 = vsyncpa %s16, 0
    loop: start=0, step=1, limit=4
    $region2: #{mnist_usps_forward.1} parent=1 // loop_pre_header
      _
    $region3: #{mnist_usps_forward.1} parent=1 // loop_header
      %s19 = sphi 0, %s23
      %p20 = scmp.ge.s32.totalorder %s19, 4
      %s29 = sphi 0, %s31
      %s32 = sphi 0, %s29
      %s33 = sphi 0, %s32
      %s49 = sphi 0, %s33
      %s53 = sphi 0, %s53
      %s55 = sphi 0, %s53
      %s56 = sphi 0, %s55
      %s70 = sphi 0, %s56
      %s74 = sphi 0, %s74
      %s76 = sphi 0, %s74
      %s77 = sphi 0, %s76
      %s91 = sphi 0, %s77
      %s95 = sphi 0, %s95
      %s97 = sphi 0, %s95
      %s98 = sphi 0, %s97
      %s112 = sphi 0, %s98
      %s116 = sphi 0, %s116
      %s118 = sphi 0, %s116
      %s119 = sphi 0, %s118
      %s133 = sphi 0, %s119
      %s137 = sphi 0, %s137
      %s139 = sphi 0, %s137
      %s140 = sphi 0, %s139
      %s154 = sphi 0, %s140
      %s158 = sphi 0, %s158
      %s160 = sphi 0, %s158
      %s161 = sphi 0, %s160
      %s175 = sphi 0, %s161
      %s179 = sphi 0, %s179
      %s181 = sphi 0, %s179
      %s182 = sphi 0, %s181
      %s196 = sphi 0, %s182
      %s200 = sphi 0, %s200
      %s202 = sphi 0, %s200
      %s203 = sphi 0, %s202
      %s217 = sphi 0, %s203
      %s221 = sphi 0, %s221
      %s223 = sphi 0, %s221
      %s224 = sphi 0, %s223
      %s238 = sphi 0, %s224
      %s244 = sphi 0, %s246
      %s247 = sphi 0, %s244
      %s248 = sphi 0, %s247
      %s264 = sphi 0, %s248
    $region4: #{mnist_usps_forward.1} parent=1 // loop_header_branch
      %22 = sbr.rel (%p20) target = $region8
    $region5: #{mnist_usps_forward.1} parent=1 // loop_body
      %s24 = ssub.s32 %s19, 1
      %s25 = ssub.s32 %s19, 2
      %s26 = sadd.s32 %s19, 1
      %s27 = ssub.s32 %s19, %s26
      %p28 = scmp.eq.s32.totalorder %s27, 0
      %s30 = sadd.s32 %s29, 1
      %s31 = scalar_select %p28, %s29, %s30
      %p34 = pneg %p28
      %p35 = scmp.eq.s32.totalorder %s19, 1
      %p36 = por %p34, %p35
      %p37 = scmp.ne.s32.totalorder %s29, %s32
      %p38 = scmp.eq.s32.totalorder %s19, 0
      %p39 = por %p37, %p38
      %p40 = scmp.ne.s32.totalorder %s29, %s32
      %p41 = scmp.eq.s32.totalorder %s24, 1
      %p42 = por %p40, %p41
      %p43 = scmp.ne.s32.totalorder %s32, %s33
      %p44 = scmp.eq.s32.totalorder %s24, 0
      %p45 = por %p43, %p44
      %p46 = scmp.ne.s32.totalorder %s32, %s33
      %p47 = scmp.eq.s32.totalorder %s25, 1
      %p48 = por %p46, %p47
      %p50 = scmp.ne.s32.totalorder %s33, %s49
      %p51 = scmp.eq.s32.totalorder %s25, 0
      %p52 = por %p50, %p51
      %s54 = sadd.s32 %s53, 1
      %p57 = scmp.eq.s32.totalorder %s19, 1
      %p58 = scmp.ne.s32.totalorder %s53, %s55
      %p59 = scmp.eq.s32.totalorder %s19, 0
      %p60 = por %p58, %p59
      %p61 = scmp.ne.s32.totalorder %s53, %s55
      %p62 = scmp.eq.s32.totalorder %s24, 1
      %p63 = por %p61, %p62
      %p64 = scmp.ne.s32.totalorder %s55, %s56
      %p65 = scmp.eq.s32.totalorder %s24, 0
      %p66 = por %p64, %p65
      %p67 = scmp.ne.s32.totalorder %s55, %s56
      %p68 = scmp.eq.s32.totalorder %s25, 1
      %p69 = por %p67, %p68
      %p71 = scmp.ne.s32.totalorder %s56, %s70
      %p72 = scmp.eq.s32.totalorder %s25, 0
      %p73 = por %p71, %p72
      %s75 = sadd.s32 %s74, 1
      %p78 = scmp.eq.s32.totalorder %s19, 1
      %p79 = scmp.ne.s32.totalorder %s74, %s76
      %p80 = scmp.eq.s32.totalorder %s19, 0
      %p81 = por %p79, %p80
      %p82 = scmp.ne.s32.totalorder %s74, %s76
      %p83 = scmp.eq.s32.totalorder %s24, 1
      %p84 = por %p82, %p83
      %p85 = scmp.ne.s32.totalorder %s76, %s77
      %p86 = scmp.eq.s32.totalorder %s24, 0
      %p87 = por %p85, %p86
      %p88 = scmp.ne.s32.totalorder %s76, %s77
      %p89 = scmp.eq.s32.totalorder %s25, 1
      %p90 = por %p88, %p89
      %p92 = scmp.ne.s32.totalorder %s77, %s91
      %p93 = scmp.eq.s32.totalorder %s25, 0
      %p94 = por %p92, %p93
      %s96 = sadd.s32 %s95, 1
      %p99 = scmp.eq.s32.totalorder %s19, 1
      %p100 = scmp.ne.s32.totalorder %s95, %s97
      %p101 = scmp.eq.s32.totalorder %s19, 0
      %p102 = por %p100, %p101
      %p103 = scmp.ne.s32.totalorder %s95, %s97
      %p104 = scmp.eq.s32.totalorder %s24, 1
      %p105 = por %p103, %p104
      %p106 = scmp.ne.s32.totalorder %s97, %s98
      %p107 = scmp.eq.s32.totalorder %s24, 0
      %p108 = por %p106, %p107
      %p109 = scmp.ne.s32.totalorder %s97, %s98
      %p110 = scmp.eq.s32.totalorder %s25, 1
      %p111 = por %p109, %p110
      %p113 = scmp.ne.s32.totalorder %s98, %s112
      %p114 = scmp.eq.s32.totalorder %s25, 0
      %p115 = por %p113, %p114
      %s117 = sadd.s32 %s116, 1
      %p120 = scmp.eq.s32.totalorder %s19, 1
      %p121 = scmp.ne.s32.totalorder %s116, %s118
      %p122 = scmp.eq.s32.totalorder %s19, 0
      %p123 = por %p121, %p122
      %p124 = scmp.ne.s32.totalorder %s116, %s118
      %p125 = scmp.eq.s32.totalorder %s24, 1
      %p126 = por %p124, %p125
      %p127 = scmp.ne.s32.totalorder %s118, %s119
      %p128 = scmp.eq.s32.totalorder %s24, 0
      %p129 = por %p127, %p128
      %p130 = scmp.ne.s32.totalorder %s118, %s119
      %p131 = scmp.eq.s32.totalorder %s25, 1
      %p132 = por %p130, %p131
      %p134 = scmp.ne.s32.totalorder %s119, %s133
      %p135 = scmp.eq.s32.totalorder %s25, 0
      %p136 = por %p134, %p135
      %s138 = sadd.s32 %s137, 1
      %p141 = scmp.eq.s32.totalorder %s19, 1
      %p142 = scmp.ne.s32.totalorder %s137, %s139
      %p143 = scmp.eq.s32.totalorder %s19, 0
      %p144 = por %p142, %p143
      %p145 = scmp.ne.s32.totalorder %s137, %s139
      %p146 = scmp.eq.s32.totalorder %s24, 1
      %p147 = por %p145, %p146
      %p148 = scmp.ne.s32.totalorder %s139, %s140
      %p149 = scmp.eq.s32.totalorder %s24, 0
      %p150 = por %p148, %p149
      %p151 = scmp.ne.s32.totalorder %s139, %s140
      %p152 = scmp.eq.s32.totalorder %s25, 1
      %p153 = por %p151, %p152
      %p155 = scmp.ne.s32.totalorder %s140, %s154
      %p156 = scmp.eq.s32.totalorder %s25, 0
      %p157 = por %p155, %p156
      %s159 = sadd.s32 %s158, 1
      %p162 = scmp.eq.s32.totalorder %s19, 1
      %p163 = scmp.ne.s32.totalorder %s158, %s160
      %p164 = scmp.eq.s32.totalorder %s19, 0
      %p165 = por %p163, %p164
      %p166 = scmp.ne.s32.totalorder %s158, %s160
      %p167 = scmp.eq.s32.totalorder %s24, 1
      %p168 = por %p166, %p167
      %p169 = scmp.ne.s32.totalorder %s160, %s161
      %p170 = scmp.eq.s32.totalorder %s24, 0
      %p171 = por %p169, %p170
      %p172 = scmp.ne.s32.totalorder %s160, %s161
      %p173 = scmp.eq.s32.totalorder %s25, 1
      %p174 = por %p172, %p173
      %p176 = scmp.ne.s32.totalorder %s161, %s175
      %p177 = scmp.eq.s32.totalorder %s25, 0
      %p178 = por %p176, %p177
      %s180 = sadd.s32 %s179, 1
      %p183 = scmp.eq.s32.totalorder %s19, 1
      %p184 = scmp.ne.s32.totalorder %s179, %s181
      %p185 = scmp.eq.s32.totalorder %s19, 0
      %p186 = por %p184, %p185
      %p187 = scmp.ne.s32.totalorder %s179, %s181
      %p188 = scmp.eq.s32.totalorder %s24, 1
      %p189 = por %p187, %p188
      %p190 = scmp.ne.s32.totalorder %s181, %s182
      %p191 = scmp.eq.s32.totalorder %s24, 0
      %p192 = por %p190, %p191
      %p193 = scmp.ne.s32.totalorder %s181, %s182
      %p194 = scmp.eq.s32.totalorder %s25, 1
      %p195 = por %p193, %p194
      %p197 = scmp.ne.s32.totalorder %s182, %s196
      %p198 = scmp.eq.s32.totalorder %s25, 0
      %p199 = por %p197, %p198
      %s201 = sadd.s32 %s200, 1
      %p204 = scmp.eq.s32.totalorder %s19, 1
      %p205 = scmp.ne.s32.totalorder %s200, %s202
      %p206 = scmp.eq.s32.totalorder %s19, 0
      %p207 = por %p205, %p206
      %p208 = scmp.ne.s32.totalorder %s200, %s202
      %p209 = scmp.eq.s32.totalorder %s24, 1
      %p210 = por %p208, %p209
      %p211 = scmp.ne.s32.totalorder %s202, %s203
      %p212 = scmp.eq.s32.totalorder %s24, 0
      %p213 = por %p211, %p212
      %p214 = scmp.ne.s32.totalorder %s202, %s203
      %p215 = scmp.eq.s32.totalorder %s25, 1
      %p216 = por %p214, %p215
      %p218 = scmp.ne.s32.totalorder %s203, %s217
      %p219 = scmp.eq.s32.totalorder %s25, 0
      %p220 = por %p218, %p219
      %s222 = sadd.s32 %s221, 1
      %p225 = scmp.eq.s32.totalorder %s19, 1
      %p226 = scmp.ne.s32.totalorder %s221, %s223
      %p227 = scmp.eq.s32.totalorder %s19, 0
      %p228 = por %p226, %p227
      %p229 = scmp.ne.s32.totalorder %s221, %s223
      %p230 = scmp.eq.s32.totalorder %s24, 1
      %p231 = por %p229, %p230
      %p232 = scmp.ne.s32.totalorder %s223, %s224
      %p233 = scmp.eq.s32.totalorder %s24, 0
      %p234 = por %p232, %p233
      %p235 = scmp.ne.s32.totalorder %s223, %s224
      %p236 = scmp.eq.s32.totalorder %s25, 1
      %p237 = por %p235, %p236
      %p239 = scmp.ne.s32.totalorder %s224, %s238
      %p240 = scmp.eq.s32.totalorder %s25, 0
      %p241 = por %p239, %p240
      %s242 = ssub.s32 %s19, %s26
      %p243 = scmp.eq.s32.totalorder %s242, 0
      %s245 = sadd.s32 %s244, 1
      %s246 = scalar_select %p243, %s244, %s245
      %p249 = pneg %p243
      %p250 = scmp.eq.s32.totalorder %s19, 1
      %p251 = por %p249, %p250
      %p252 = scmp.ne.s32.totalorder %s244, %s247
      %p253 = scmp.eq.s32.totalorder %s19, 0
      %p254 = por %p252, %p253
      %p255 = scmp.ne.s32.totalorder %s244, %s247
      %p256 = scmp.eq.s32.totalorder %s24, 1
      %p257 = por %p255, %p256
      %p258 = scmp.ne.s32.totalorder %s247, %s248
      %p259 = scmp.eq.s32.totalorder %s24, 0
      %p260 = por %p258, %p259
      %p261 = scmp.ne.s32.totalorder %s247, %s248
      %p262 = scmp.eq.s32.totalorder %s25, 1
      %p263 = por %p261, %p262
      %p265 = scmp.ne.s32.totalorder %s248, %s264
      %p266 = scmp.eq.s32.totalorder %s25, 0
      %p267 = por %p265, %p266
      %p268 = scmp.le.s32.totalorder 1, %s19
      %p269 = scmp.lt.s32.totalorder %s19, 3
      %p270 = pnand %p268, %p269
      %p271 = pneg %p270
      // Predicated region
      $region9: #{mnist_usps_forward.1} parent=5 // pred_check
        _
      $region10: #{mnist_usps_forward.1} parent=5 // pred_check_branch
        %273 = sbr.rel (%p270) target = $region12
      $region11: #{mnist_usps_forward.1} parent=5 // pred_region
        %s274 = ssub.s32 %s19, 1
        // Predicated region
        $region13: #{mnist_usps_forward.1} parent=11 // pred_check
          %p275 = pneg %p66
        $region14: #{mnist_usps_forward.1} parent=11 // pred_check_branch
          %277 = sbr.rel (%p275) target = $region16
        $region15: #{mnist_usps_forward.1} parent=11 // pred_region
          _
        $region16: #{mnist_usps_forward.1} parent=11 // pred_fallthru
          _
        // Predicated region
        $region17: #{mnist_usps_forward.1} parent=11 // pred_check
          %p278 = pneg %p87
        $region18: #{mnist_usps_forward.1} parent=11 // pred_check_branch
          %280 = sbr.rel (%p278) target = $region20
        $region19: #{mnist_usps_forward.1} parent=11 // pred_region
          _
        $region20: #{mnist_usps_forward.1} parent=11 // pred_fallthru
          _
        // Predicated region
        $region21: #{mnist_usps_forward.1} parent=11 // pred_check
          %p281 = pneg %p108
        $region22: #{mnist_usps_forward.1} parent=11 // pred_check_branch
          %283 = sbr.rel (%p281) target = $region24
        $region23: #{mnist_usps_forward.1} parent=11 // pred_region
          _
        $region24: #{mnist_usps_forward.1} parent=11 // pred_fallthru
          _
        // Predicated region
        $region25: #{mnist_usps_forward.1} parent=11 // pred_check
          %p284 = pneg %p129
        $region26: #{mnist_usps_forward.1} parent=11 // pred_check_branch
          %286 = sbr.rel (%p284) target = $region28
        $region27: #{mnist_usps_forward.1} parent=11 // pred_region
          _
        $region28: #{mnist_usps_forward.1} parent=11 // pred_fallthru
          _
        // Predicated region
        $region29: #{mnist_usps_forward.1} parent=11 // pred_check
          %p287 = pneg %p150
        $region30: #{mnist_usps_forward.1} parent=11 // pred_check_branch
          %289 = sbr.rel (%p287) target = $region32
        $region31: #{mnist_usps_forward.1} parent=11 // pred_region
          _
        $region32: #{mnist_usps_forward.1} parent=11 // pred_fallthru
          _
        // Predicated region
        $region33: #{mnist_usps_forward.1} parent=11 // pred_check
          %p290 = pneg %p171
        $region34: #{mnist_usps_forward.1} parent=11 // pred_check_branch
          %292 = sbr.rel (%p290) target = $region36
        $region35: #{mnist_usps_forward.1} parent=11 // pred_region
          _
        $region36: #{mnist_usps_forward.1} parent=11 // pred_fallthru
          _
        // Predicated region
        $region37: #{mnist_usps_forward.1} parent=11 // pred_check
          %p293 = pneg %p192
        $region38: #{mnist_usps_forward.1} parent=11 // pred_check_branch
          %295 = sbr.rel (%p293) target = $region40
        $region39: #{mnist_usps_forward.1} parent=11 // pred_region
          _
        $region40: #{mnist_usps_forward.1} parent=11 // pred_fallthru
          _
        // Predicated region
        $region41: #{mnist_usps_forward.1} parent=11 // pred_check
          %p296 = pneg %p213
        $region42: #{mnist_usps_forward.1} parent=11 // pred_check_branch
          %298 = sbr.rel (%p296) target = $region44
        $region43: #{mnist_usps_forward.1} parent=11 // pred_region
          _
        $region44: #{mnist_usps_forward.1} parent=11 // pred_fallthru
          _
        // Predicated region
        $region45: #{mnist_usps_forward.1} parent=11 // pred_check
          %p299 = pneg %p234
        $region46: #{mnist_usps_forward.1} parent=11 // pred_check_branch
          %301 = sbr.rel (%p299) target = $region48
        $region47: #{mnist_usps_forward.1} parent=11 // pred_region
          _
        $region48: #{mnist_usps_forward.1} parent=11 // pred_fallthru
          _
      $region12: #{mnist_usps_forward.1} parent=5 // pred_fallthru
        _
      %p302 = scmp.lt.s32.totalorder %s19, 2
      // Predicated region
      $region49: #{mnist_usps_forward.1} parent=5 // pred_check
        %p303 = pneg %p302
      $region50: #{mnist_usps_forward.1} parent=5 // pred_check_branch
        %305 = sbr.rel (%p303) target = $region52
      $region51: #{mnist_usps_forward.1} parent=5 // pred_region
        // Predicated region
        $region53: #{mnist_usps_forward.1} parent=51 // pred_check
          %p306 = pneg %p39
        $region54: #{mnist_usps_forward.1} parent=51 // pred_check_branch
          %308 = sbr.rel (%p306) target = $region56
        $region55: #{mnist_usps_forward.1} parent=51 // pred_region
          %p309 = scmp.lt.s32.totalorder %s19, 1
          %s310 = scalar_select %p309, %s19, 1
          %s311 = smul.addr %s310, 4
          %s312 = smul.addr %s311, 8
          %s313 = scalar_lea.vmem %s0, %s312
        $region56: #{mnist_usps_forward.1} parent=51 // pred_fallthru
          _
      $region52: #{mnist_usps_forward.1} parent=5 // pred_fallthru
        _
      %p314 = scmp.le.s32.totalorder 1, %s19
      %p315 = scmp.lt.s32.totalorder %s19, 3
      %p316 = pnand %p314, %p315
      %p317 = pneg %p316
      // Predicated region
      $region57: #{mnist_usps_forward.1} parent=5 // pred_check
        _
      $region58: #{mnist_usps_forward.1} parent=5 // pred_check_branch
        %319 = sbr.rel (%p316) target = $region60
      $region59: #{mnist_usps_forward.1} parent=5 // pred_region
        %s320 = ssub.s32 %s19, 1
        %p321 = scmp.lt.s32.totalorder %s24, 1
        %s322 = scalar_select %p321, %s24, 1
        %s323 = smul.addr %s322, 4
        %s324 = smul.addr %s323, 8
        %s325 = scalar_lea.vmem %s0, %s324
        %p326 = pneg %p45
        %p327 = pneg %p42
        %p328 = pneg %p66
        %p329 = pneg %p63
        %p330 = pneg %p87
        %p331 = pneg %p84
        %p332 = pneg %p108
        %p333 = pneg %p105
        %p334 = pneg %p129
        %p335 = pneg %p126
        %p336 = pneg %p150
        %p337 = pneg %p147
        %p338 = pneg %p171
        %p339 = pneg %p168
        %p340 = pneg %p192
        %p341 = pneg %p189
        %p342 = pneg %p213
        %p343 = pneg %p210
        %p344 = pneg %p234
        %p345 = pneg %p231
        %p346 = pneg %p260
        %p347 = pneg %p257
        %s348 = sand.u32 %s247, 1
        %s349 = scalar_lea.sflag [#allocation7], %s348
        %s350 = sand.u32 %s247, 1
        %s351 = scalar_lea.vmem [#allocation6], %s350
        %p352 = scmp.lt.s32.totalorder %s24, 1
        %s353 = scalar_select %p352, %s24, 1
        %s354 = smul.addr %s353, 4
        %s355 = smul.addr %s354, 8
        %s356 = scalar_lea.vmem %s0, %s355
        %v357 = vld [vmem:[%s1] sm:$0xff]
        %v358 = vld [vmem:[%s1 + $0x8] sm:$0xff]
        %v359 = vld [vmem:[%s1 + $0x10] sm:$0xff]
        %v360 = vld [vmem:[%s1 + $0x18] sm:$0xf]
        %v361 = vld [vmem:[%s356] sm:$0xff]
        %v362 = vld [vmem:[%s356 + $0x8] sm:$0xff]
        %v363 = vld [vmem:[%s356 + $0x10] sm:$0xff]
        %v364 = vld [vmem:[%s356 + $0x18] sm:$0xf]
        %vm365 = vcmask 228352
        %v367 = vsel %vm365, %v357, 0
        %v370 = vsel %vm365, %v358, 0
        %v373 = vsel %vm365, %v359, 0
        %v376 = vsel %vm365, %v360, 0
        %vm378 = vcmask 1043456
        %v380 = vsel %vm378, %v364, 0
        %382 = vmatprep.subr.mxu0 0.0
        %383 = vmatpush1.msra.mxu0 %v361
        %384 = vmatprep.subr.mxu0 0.0
        %385 = vmatpush1.msra.mxu0 %v362
        %386 = vmatprep.subr.mxu0 0.0
        %387 = vmatpush1.msra.mxu0 %v363
        %388 = vmatprep.subr.mxu0 0.0
        %389 = vmatpush1.msra.mxu0 %v380
        %390 = vmatprep.subr.mxu0 0.0
        %391 = vmatpush1.msra.mxu0 0.0
        %392 = vmatprep.subr.mxu0 0.0
        %393 = vmatpush1.msra.mxu0 0.0
        %394 = vmatprep.subr.mxu0 0.0
        %395 = vmatpush1.msra.mxu0 0.0
        %396 = vmatprep.subr.mxu0 0.0
        %397 = vmatpush1.msra.mxu0 0.0
        %398 = vmatprep.subr.mxu0 0.0
        %399 = vmatpush1.msra.mxu0 0.0
        %400 = vmatprep.subr.mxu0 0.0
        %401 = vmatpush1.msra.mxu0 0.0
        %402 = vmatprep.subr.mxu0 0.0
        %403 = vmatpush1.msra.mxu0 0.0
        %404 = vmatprep.subr.mxu0 0.0
        %405 = vmatpush1.msra.mxu0 0.0
        %406 = vmatprep.subr.mxu0 0.0
        %407 = vmatpush1.msra.mxu0 0.0
        %408 = vmatprep.subr.mxu0 0.0
        %409 = vmatpush1.msra.mxu0 0.0
        %410 = vmatprep.subr.mxu0 0.0
        %411 = vmatpush1.msra.mxu0 0.0
        %412 = vmatprep.subr.mxu0 0.0
        %413 = vmatpush1.msra.mxu0 0.0
        %414 = vmatprep.subr.mxu0 0.0
        %415 = vmatpush1.msra.mxu0 0.0
        %416 = vmatprep.subr.mxu0 0.0
        %417 = vmatpush1.msra.mxu0 0.0
        %418 = vmatprep.subr.mxu0 0.0
        %419 = vmatpush1.msra.mxu0 0.0
        %420 = vmatprep.subr.mxu0 0.0
        %421 = vmatpush1.msra.mxu0 0.0
        %422 = vmatprep.subr.mxu0 0.0
        %423 = vmatpush1.msra.mxu0 0.0
        %424 = vmatprep.subr.mxu0 0.0
        %425 = vmatpush1.msra.mxu0 0.0
        %426 = vmatprep.subr.mxu0 0.0
        %427 = vmatpush1.msra.mxu0 0.0
        %428 = vmatprep.subr.mxu0 0.0
        %429 = vmatpush1.msra.mxu0 0.0
        %430 = vmatprep.subr.mxu0 0.0
        %431 = vmatpush1.msra.mxu0 0.0
        %432 = vmatprep.subr.mxu0 0.0
        %433 = vmatpush1.msra.mxu0 0.0
        %434 = vmatprep.subr.mxu0 0.0
        %435 = vmatpush1.msra.mxu0 0.0
        %436 = vmatprep.subr.mxu0 0.0
        %437 = vmatpush1.msra.mxu0 0.0
        %438 = vmatprep.subr.mxu0 0.0
        %439 = vmatpush1.msra.mxu0 0.0
        %440 = vmatprep.subr.mxu0 0.0
        %441 = vmatpush1.msra.mxu0 0.0
        %442 = vmatprep.subr.mxu0 0.0
        %443 = vmatpush1.msra.mxu0 0.0
        %444 = vmatprep.subr.mxu0 0.0
        %445 = vmatpush1.msra.mxu0 0.0
        %446 = vmatprep.mubr.f32.mxu0 0.0
        %447 = vmatmul.mubr.f32.gmra.mrb[0].mxu0 %v367
        %v448 = vpop.f32.mrb[0].mxu0
        %v449 = vadd.f32 0.0, %v448
        %v450 = vpop.f32.mrb[0].mxu0
        %451 = vmatprep.mubr.f32.mxu0 0.0
        %452 = vmatmul.mubr.f32.gmra.mrb[0].mxu0 %v370
        %v453 = vpop.f32.mrb[0].mxu0
        %v454 = vadd.f32 0.0, %v453
        %v455 = vpop.f32.mrb[0].mxu0
        %456 = vmatprep.mubr.f32.mxu0 0.0
        %457 = vmatmul.mubr.f32.gmra.mrb[0].mxu0 %v373
        %v458 = vpop.f32.mrb[0].mxu0
        %v459 = vadd.f32 0.0, %v458
        %v460 = vpop.f32.mrb[0].mxu0
        %461 = vmatprep.mubr.f32.mxu0 0.0
        %462 = vmatmul.mubr.f32.gmra.mrb[0].mxu0 %v376
        %v463 = vpop.f32.mrb[0].mxu0
        %v464 = vadd.f32 0.0, %v463
        %v465 = vpop.f32.mrb[0].mxu0
        %466 = vdwg.mxu0
        %467 = vst.msk [vmem:[#allocation2] sm:$0xff] %vm365, %v449
        %468 = vst.msk [vmem:[#allocation2 + $0x8] sm:$0xff] %vm365, %v454
        %469 = vst.msk [vmem:[#allocation2 + $0x10] sm:$0xff] %vm365, %v459
        %vm470 = vcmask 224256
        %471 = vst.msk [vmem:[#allocation2 + $0x18] sm:$0xf] %vm470, %v464
        %v472 = vld [vmem:[#allocation2] sm:$0xff]
        %v473 = vld [vmem:[#allocation2 + $0x8] sm:$0xf]
        %v474 = vld [vmem:[%s2] sm:$0xff]
        %v475 = vld [vmem:[%s2 + $0x8] sm:$0xff]
        %v476 = vld [vmem:[%s2 + $0x10] sm:$0xff]
        %v477 = vld [vmem:[%s2 + $0x18] sm:$0xf]
        %v478 = vld [vmem:[#allocation2 + $0xe] sm:$0xff]
        %v479 = vld [vmem:[#allocation2 + $0x16] sm:$0xf]
        %s480 = scalar_lea.vmem %s2, 32
        %v481 = vld [vmem:[%s480] sm:$0xff]
        %v482 = vld [vmem:[%s480 + $0x8] sm:$0xff]
        %v483 = vld [vmem:[%s480 + $0x10] sm:$0xff]
        %v484 = vld [vmem:[%s480 + $0x18] sm:$0xf]
        %v486 = vsel %vm365, %v478, 0
        %v489 = vsel %vm365, %v479, 0
        %v492 = vsel %vm378, %v484, 0
        %494 = vmatprep.subr.mxu0 0.0
        %495 = vmatpush1.msra.mxu0 %v481
        %496 = vmatprep.subr.mxu0 0.0
        %497 = vmatpush1.msra.mxu0 %v482
        %498 = vmatprep.subr.mxu0 0.0
        %499 = vmatpush1.msra.mxu0 %v483
        %500 = vmatprep.subr.mxu0 0.0
        %501 = vmatpush1.msra.mxu0 %v492
        %502 = vmatprep.subr.mxu0 0.0
        %503 = vmatpush1.msra.mxu0 0.0
        %504 = vmatprep.subr.mxu0 0.0
        %505 = vmatpush1.msra.mxu0 0.0
        %506 = vmatprep.subr.mxu0 0.0
        %507 = vmatpush1.msra.mxu0 0.0
        %508 = vmatprep.subr.mxu0 0.0
        %509 = vmatpush1.msra.mxu0 0.0
        %510 = vmatprep.subr.mxu0 0.0
        %511 = vmatpush1.msra.mxu0 0.0
        %512 = vmatprep.subr.mxu0 0.0
        %513 = vmatpush1.msra.mxu0 0.0
        %514 = vmatprep.subr.mxu0 0.0
        %515 = vmatpush1.msra.mxu0 0.0
        %516 = vmatprep.subr.mxu0 0.0
        %517 = vmatpush1.msra.mxu0 0.0
        %518 = vmatprep.subr.mxu0 0.0
        %519 = vmatpush1.msra.mxu0 0.0
        %520 = vmatprep.subr.mxu0 0.0
        %521 = vmatpush1.msra.mxu0 0.0
        %522 = vmatprep.subr.mxu0 0.0
        %523 = vmatpush1.msra.mxu0 0.0
        %524 = vmatprep.subr.mxu0 0.0
        %525 = vmatpush1.msra.mxu0 0.0
        %526 = vmatprep.subr.mxu0 0.0
        %527 = vmatpush1.msra.mxu0 0.0
        %528 = vmatprep.subr.mxu0 0.0
        %529 = vmatpush1.msra.mxu0 0.0
        %530 = vmatprep.subr.mxu0 0.0
        %531 = vmatpush1.msra.mxu0 0.0
        %532 = vmatprep.subr.mxu0 0.0
        %533 = vmatpush1.msra.mxu0 0.0
        %534 = vmatprep.subr.mxu0 0.0
        %535 = vmatpush1.msra.mxu0 0.0
        %536 = vmatprep.subr.mxu0 0.0
        %537 = vmatpush1.msra.mxu0 0.0
        %538 = vmatprep.subr.mxu0 0.0
        %539 = vmatpush1.msra.mxu0 0.0
        %540 = vmatprep.subr.mxu0 0.0
        %541 = vmatpush1.msra.mxu0 0.0
        %542 = vmatprep.subr.mxu0 0.0
        %543 = vmatpush1.msra.mxu0 0.0
        %544 = vmatprep.subr.mxu0 0.0
        %545 = vmatpush1.msra.mxu0 0.0
        %546 = vmatprep.subr.mxu0 0.0
        %547 = vmatpush1.msra.mxu0 0.0
        %548 = vmatprep.subr.mxu0 0.0
        %549 = vmatpush1.msra.mxu0 0.0
        %550 = vmatprep.subr.mxu0 0.0
        %551 = vmatpush1.msra.mxu0 0.0
        %552 = vmatprep.subr.mxu0 0.0
        %553 = vmatpush1.msra.mxu0 0.0
        %554 = vmatprep.subr.mxu0 0.0
        %555 = vmatpush1.msra.mxu0 0.0
        %556 = vmatprep.subr.mxu0 0.0
        %557 = vmatpush1.msra.mxu0 0.0
        %558 = vmatprep.mubr.f32.mxu0 0.0
        %559 = vmatmul.mubr.f32.gmra.mrb[0].mxu0 %v486
        %v560 = vpop.f32.mrb[0].mxu0
        %v561 = vadd.f32 0.0, %v560
        %v562 = vpop.f32.mrb[0].mxu0
        %563 = vmatprep.mubr.f32.mxu0 0.0
        %564 = vmatmul.mubr.f32.gmra.mrb[0].mxu0 %v489
        %v565 = vpop.f32.mrb[0].mxu0
        %v566 = vadd.f32 0.0, %v565
        %v567 = vpop.f32.mrb[0].mxu0
        %568 = vdwg.mxu0
        %v570 = vsel %vm365, %v472, 0
        %v573 = vsel %vm365, %v473, 0
        %v576 = vsel %vm378, %v477, 0
        %578 = vmatprep.subr.mxu0 0.0
        %579 = vmatpush1.msra.mxu0 %v474
        %580 = vmatprep.subr.mxu0 0.0
        %581 = vmatpush1.msra.mxu0 %v475
        %582 = vmatprep.subr.mxu0 0.0
        %583 = vmatpush1.msra.mxu0 %v476
        %584 = vmatprep.subr.mxu0 0.0
        %585 = vmatpush1.msra.mxu0 %v576
        %586 = vmatprep.subr.mxu0 0.0
        %587 = vmatpush1.msra.mxu0 0.0
        %588 = vmatprep.subr.mxu0 0.0
        %589 = vmatpush1.msra.mxu0 0.0
        %590 = vmatprep.subr.mxu0 0.0
        %591 = vmatpush1.msra.mxu0 0.0
        %592 = vmatprep.subr.mxu0 0.0
        %593 = vmatpush1.msra.mxu0 0.0
        %594 = vmatprep.subr.mxu0 0.0
        %595 = vmatpush1.msra.mxu0 0.0
        %596 = vmatprep.subr.mxu0 0.0
        %597 = vmatpush1.msra.mxu0 0.0
        %598 = vmatprep.subr.mxu0 0.0
        %599 = vmatpush1.msra.mxu0 0.0
        %600 = vmatprep.subr.mxu0 0.0
        %601 = vmatpush1.msra.mxu0 0.0
        %602 = vmatprep.subr.mxu0 0.0
        %603 = vmatpush1.msra.mxu0 0.0
        %604 = vmatprep.subr.mxu0 0.0
        %605 = vmatpush1.msra.mxu0 0.0
        %606 = vmatprep.subr.mxu0 0.0
        %607 = vmatpush1.msra.mxu0 0.0
        %608 = vmatprep.subr.mxu0 0.0
        %609 = vmatpush1.msra.mxu0 0.0
        %610 = vmatprep.subr.mxu0 0.0
        %611 = vmatpush1.msra.mxu0 0.0
        %612 = vmatprep.subr.mxu0 0.0
        %613 = vmatpush1.msra.mxu0 0.0
        %614 = vmatprep.subr.mxu0 0.0
        %615 = vmatpush1.msra.mxu0 0.0
        %616 = vmatprep.subr.mxu0 0.0
        %617 = vmatpush1.msra.mxu0 0.0
        %618 = vmatprep.subr.mxu0 0.0
        %619 = vmatpush1.msra.mxu0 0.0
        %620 = vmatprep.subr.mxu0 0.0
        %621 = vmatpush1.msra.mxu0 0.0
        %622 = vmatprep.subr.mxu0 0.0
        %623 = vmatpush1.msra.mxu0 0.0
        %624 = vmatprep.subr.mxu0 0.0
        %625 = vmatpush1.msra.mxu0 0.0
        %626 = vmatprep.subr.mxu0 0.0
        %627 = vmatpush1.msra.mxu0 0.0
        %628 = vmatprep.subr.mxu0 0.0
        %629 = vmatpush1.msra.mxu0 0.0
        %630 = vmatprep.subr.mxu0 0.0
        %631 = vmatpush1.msra.mxu0 0.0
        %632 = vmatprep.subr.mxu0 0.0
        %633 = vmatpush1.msra.mxu0 0.0
        %634 = vmatprep.subr.mxu0 0.0
        %635 = vmatpush1.msra.mxu0 0.0
        %636 = vmatprep.subr.mxu0 0.0
        %637 = vmatpush1.msra.mxu0 0.0
        %638 = vmatprep.subr.mxu0 0.0
        %639 = vmatpush1.msra.mxu0 0.0
        %640 = vmatprep.subr.mxu0 0.0
        %641 = vmatpush1.msra.mxu0 0.0
        %642 = vmatprep.mubr.f32.mxu0 0.0
        %643 = vmatmul.mubr.f32.gmra.mrb[0].mxu0 %v570
        %v644 = vpop.f32.mrb[0].mxu0
        %v645 = vadd.f32 %v561, %v644
        %v646 = vpop.f32.mrb[0].mxu0
        %647 = vmatprep.mubr.f32.mxu0 0.0
        %648 = vmatmul.mubr.f32.gmra.mrb[0].mxu0 %v573
        %v649 = vpop.f32.mrb[0].mxu0
        %v650 = vadd.f32 %v566, %v649
        %v651 = vpop.f32.mrb[0].mxu0
        %652 = vdwg.mxu0
        %v653 = vld [vmem:[#allocation2 + $0x1] sm:$0xff]
        %v654 = vld [vmem:[#allocation2 + $0x9] sm:$0xf]
        %s655 = scalar_lea.vmem %s2, 64
        %v656 = vld [vmem:[%s655] sm:$0xff]
        %v657 = vld [vmem:[%s655 + $0x8] sm:$0xff]
        %v658 = vld [vmem:[%s655 + $0x10] sm:$0xff]
        %v659 = vld [vmem:[%s655 + $0x18] sm:$0xf]
        %v661 = vsel %vm365, %v653, 0
        %v664 = vsel %vm365, %v654, 0
        %v667 = vsel %vm378, %v659, 0
        %669 = vmatprep.subr.mxu0 0.0
        %670 = vmatpush1.msra.mxu0 %v656
        %671 = vmatprep.subr.mxu0 0.0
        %672 = vmatpush1.msra.mxu0 %v657
        %673 = vmatprep.subr.mxu0 0.0
        %674 = vmatpush1.msra.mxu0 %v658
        %675 = vmatprep.subr.mxu0 0.0
        %676 = vmatpush1.msra.mxu0 %v667
        %677 = vmatprep.subr.mxu0 0.0
        %678 = vmatpush1.msra.mxu0 0.0
        %679 = vmatprep.subr.mxu0 0.0
        %680 = vmatpush1.msra.mxu0 0.0
        %681 = vmatprep.subr.mxu0 0.0
        %682 = vmatpush1.msra.mxu0 0.0
        %683 = vmatprep.subr.mxu0 0.0
        %684 = vmatpush1.msra.mxu0 0.0
        %685 = vmatprep.subr.mxu0 0.0
        %686 = vmatpush1.msra.mxu0 0.0
        %687 = vmatprep.subr.mxu0 0.0
        %688 = vmatpush1.msra.mxu0 0.0
        %689 = vmatprep.subr.mxu0 0.0
        %690 = vmatpush1.msra.mxu0 0.0
        %691 = vmatprep.subr.mxu0 0.0
        %692 = vmatpush1.msra.mxu0 0.0
        %693 = vmatprep.subr.mxu0 0.0
        %694 = vmatpush1.msra.mxu0 0.0
        %695 = vmatprep.subr.mxu0 0.0
        %696 = vmatpush1.msra.mxu0 0.0
        %697 = vmatprep.subr.mxu0 0.0
        %698 = vmatpush1.msra.mxu0 0.0
        %699 = vmatprep.subr.mxu0 0.0
        %700 = vmatpush1.msra.mxu0 0.0
        %701 = vmatprep.subr.mxu0 0.0
        %702 = vmatpush1.msra.mxu0 0.0
        %703 = vmatprep.subr.mxu0 0.0
        %704 = vmatpush1.msra.mxu0 0.0
        %705 = vmatprep.subr.mxu0 0.0
        %706 = vmatpush1.msra.mxu0 0.0
        %707 = vmatprep.subr.mxu0 0.0
        %708 = vmatpush1.msra.mxu0 0.0
        %709 = vmatprep.subr.mxu0 0.0
        %710 = vmatpush1.msra.mxu0 0.0
        %711 = vmatprep.subr.mxu0 0.0
        %712 = vmatpush1.msra.mxu0 0.0
        %713 = vmatprep.subr.mxu0 0.0
        %714 = vmatpush1.msra.mxu0 0.0
        %715 = vmatprep.subr.mxu0 0.0
        %716 = vmatpush1.msra.mxu0 0.0
        %717 = vmatprep.subr.mxu0 0.0
        %718 = vmatpush1.msra.mxu0 0.0
        %719 = vmatprep.subr.mxu0 0.0
        %720 = vmatpush1.msra.mxu0 0.0
        %721 = vmatprep.subr.mxu0 0.0
        %722 = vmatpush1.msra.mxu0 0.0
        %723 = vmatprep.subr.mxu0 0.0
        %724 = vmatpush1.msra.mxu0 0.0
        %725 = vmatprep.subr.mxu0 0.0
        %726 = vmatpush1.msra.mxu0 0.0
        %727 = vmatprep.subr.mxu0 0.0
        %728 = vmatpush1.msra.mxu0 0.0
        %729 = vmatprep.subr.mxu0 0.0
        %730 = vmatpush1.msra.mxu0 0.0
        %731 = vmatprep.subr.mxu0 0.0
        %732 = vmatpush1.msra.mxu0 0.0
        %733 = vmatprep.mubr.f32.mxu0 0.0
        %734 = vmatmul.mubr.f32.gmra.mrb[0].mxu0 %v661
        %v735 = vpop.f32.mrb[0].mxu0
        %v736 = vadd.f32 0.0, %v735
        %v737 = vpop.f32.mrb[0].mxu0
        %738 = vmatprep.mubr.f32.mxu0 0.0
        %739 = vmatmul.mubr.f32.gmra.mrb[0].mxu0 %v664
        %v740 = vpop.f32.mrb[0].mxu0
        %v741 = vadd.f32 0.0, %v740
        %v742 = vpop.f32.mrb[0].mxu0
        %743 = vdwg.mxu0
        %v744 = vadd.f32 %v645, %v736
        %v745 = vadd.f32 %v650, %v741
        %v746 = vld [vmem:[#allocation2 + $0xf] sm:$0xff]
        %v747 = vld [vmem:[#allocation2 + $0x17] sm:$0xf]
        %s748 = scalar_lea.vmem %s2, 96
        %v749 = vld [vmem:[%s748] sm:$0xff]
        %v750 = vld [vmem:[%s748 + $0x8] sm:$0xff]
        %v751 = vld [vmem:[%s748 + $0x10] sm:$0xff]
        %v752 = vld [vmem:[%s748 + $0x18] sm:$0xf]
        %v754 = vsel %vm365, %v746, 0
        %v757 = vsel %vm365, %v747, 0
        %v760 = vsel %vm378, %v752, 0
        %762 = vmatprep.subr.mxu0 0.0
        %763 = vmatpush1.msra.mxu0 %v749
        %764 = vmatprep.subr.mxu0 0.0
        %765 = vmatpush1.msra.mxu0 %v750
        %766 = vmatprep.subr.mxu0 0.0
        %767 = vmatpush1.msra.mxu0 %v751
        %768 = vmatprep.subr.mxu0 0.0
        %769 = vmatpush1.msra.mxu0 %v760
        %770 = vmatprep.subr.mxu0 0.0
        %771 = vmatpush1.msra.mxu0 0.0
        %772 = vmatprep.subr.mxu0 0.0
        %773 = vmatpush1.msra.mxu0 0.0
        %774 = vmatprep.subr.mxu0 0.0
        %775 = vmatpush1.msra.mxu0 0.0
        %776 = vmatprep.subr.mxu0 0.0
        %777 = vmatpush1.msra.mxu0 0.0
        %778 = vmatprep.subr.mxu0 0.0
        %779 = vmatpush1.msra.mxu0 0.0
        %780 = vmatprep.subr.mxu0 0.0
        %781 = vmatpush1.msra.mxu0 0.0
        %782 = vmatprep.subr.mxu0 0.0
        %783 = vmatpush1.msra.mxu0 0.0
        %784 = vmatprep.subr.mxu0 0.0
        %785 = vmatpush1.msra.mxu0 0.0
        %786 = vmatprep.subr.mxu0 0.0
        %787 = vmatpush1.msra.mxu0 0.0
        %788 = vmatprep.subr.mxu0 0.0
        %789 = vmatpush1.msra.mxu0 0.0
        %790 = vmatprep.subr.mxu0 0.0
        %791 = vmatpush1.msra.mxu0 0.0
        %792 = vmatprep.subr.mxu0 0.0
        %793 = vmatpush1.msra.mxu0 0.0
        %794 = vmatprep.subr.mxu0 0.0
        %795 = vmatpush1.msra.mxu0 0.0
        %796 = vmatprep.subr.mxu0 0.0
        %797 = vmatpush1.msra.mxu0 0.0
        %798 = vmatprep.subr.mxu0 0.0
        %799 = vmatpush1.msra.mxu0 0.0
        %800 = vmatprep.subr.mxu0 0.0
        %801 = vmatpush1.msra.mxu0 0.0
        %802 = vmatprep.subr.mxu0 0.0
        %803 = vmatpush1.msra.mxu0 0.0
        %804 = vmatprep.subr.mxu0 0.0
        %805 = vmatpush1.msra.mxu0 0.0
        %806 = vmatprep.subr.mxu0 0.0
        %807 = vmatpush1.msra.mxu0 0.0
        %808 = vmatprep.subr.mxu0 0.0
        %809 = vmatpush1.msra.mxu0 0.0
        %810 = vmatprep.subr.mxu0 0.0
        %811 = vmatpush1.msra.mxu0 0.0
        %812 = vmatprep.subr.mxu0 0.0
        %813 = vmatpush1.msra.mxu0 0.0
        %814 = vmatprep.subr.mxu0 0.0
        %815 = vmatpush1.msra.mxu0 0.0
        %816 = vmatprep.subr.mxu0 0.0
        %817 = vmatpush1.msra.mxu0 0.0
        %818 = vmatprep.subr.mxu0 0.0
        %819 = vmatpush1.msra.mxu0 0.0
        %820 = vmatprep.subr.mxu0 0.0
        %821 = vmatpush1.msra.mxu0 0.0
        %822 = vmatprep.subr.mxu0 0.0
        %823 = vmatpush1.msra.mxu0 0.0
        %824 = vmatprep.subr.mxu0 0.0
        %825 = vmatpush1.msra.mxu0 0.0
        %826 = vmatprep.mubr.f32.mxu0 0.0
        %827 = vmatmul.mubr.f32.gmra.mrb[0].mxu0 %v754
        %v828 = vpop.f32.mrb[0].mxu0
        %v829 = vadd.f32 0.0, %v828
        %v830 = vpop.f32.mrb[0].mxu0
        %831 = vmatprep.mubr.f32.mxu0 0.0
        %832 = vmatmul.mubr.f32.gmra.mrb[0].mxu0 %v757
        %v833 = vpop.f32.mrb[0].mxu0
        %v834 = vadd.f32 0.0, %v833
        %v835 = vpop.f32.mrb[0].mxu0
        %836 = vdwg.mxu0
        %v837 = vadd.f32 %v744, %v829
        %v838 = vadd.f32 %v745, %v834
        %v839 = vld [vmem:[#allocation2 + $0x2] sm:$0xff]
        %v840 = vld [vmem:[#allocation2 + $0xa] sm:$0xf]
        %s841 = scalar_lea.vmem %s2, 128
        %v842 = vld [vmem:[%s841] sm:$0xff]
        %v843 = vld [vmem:[%s841 + $0x8] sm:$0xff]
        %v844 = vld [vmem:[%s841 + $0x10] sm:$0xff]
        %v845 = vld [vmem:[%s841 + $0x18] sm:$0xf]
        %v847 = vsel %vm365, %v839, 0
        %v850 = vsel %vm365, %v840, 0
        %v853 = vsel %vm378, %v845, 0
        %855 = vmatprep.subr.mxu0 0.0
        %856 = vmatpush1.msra.mxu0 %v842
        %857 = vmatprep.subr.mxu0 0.0
        %858 = vmatpush1.msra.mxu0 %v843
        %859 = vmatprep.subr.mxu0 0.0
        %860 = vmatpush1.msra.mxu0 %v844
        %861 = vmatprep.subr.mxu0 0.0
        %862 = vmatpush1.msra.mxu0 %v853
        %863 = vmatprep.subr.mxu0 0.0
        %864 = vmatpush1.msra.mxu0 0.0
        %865 = vmatprep.subr.mxu0 0.0
        %866 = vmatpush1.msra.mxu0 0.0
        %867 = vmatprep.subr.mxu0 0.0
        %868 = vmatpush1.msra.mxu0 0.0
        %869 = vmatprep.subr.mxu0 0.0
        %870 = vmatpush1.msra.mxu0 0.0
        %871 = vmatprep.subr.mxu0 0.0
        %872 = vmatpush1.msra.mxu0 0.0
        %873 = vmatprep.subr.mxu0 0.0
        %874 = vmatpush1.msra.mxu0 0.0
        %875 = vmatprep.subr.mxu0 0.0
        %876 = vmatpush1.msra.mxu0 0.0
        %877 = vmatprep.subr.mxu0 0.0
        %878 = vmatpush1.msra.mxu0 0.0
        %879 = vmatprep.subr.mxu0 0.0
        %880 = vmatpush1.msra.mxu0 0.0
        %881 = vmatprep.subr.mxu0 0.0
        %882 = vmatpush1.msra.mxu0 0.0
        %883 = vmatprep.subr.mxu0 0.0
        %884 = vmatpush1.msra.mxu0 0.0
        %885 = vmatprep.subr.mxu0 0.0
        %886 = vmatpush1.msra.mxu0 0.0
        %887 = vmatprep.subr.mxu0 0.0
        %888 = vmatpush1.msra.mxu0 0.0
        %889 = vmatprep.subr.mxu0 0.0
        %890 = vmatpush1.msra.mxu0 0.0
        %891 = vmatprep.subr.mxu0 0.0
        %892 = vmatpush1.msra.mxu0 0.0
        %893 = vmatprep.subr.mxu0 0.0
        %894 = vmatpush1.msra.mxu0 0.0
        %895 = vmatprep.subr.mxu0 0.0
        %896 = vmatpush1.msra.mxu0 0.0
        %897 = vmatprep.subr.mxu0 0.0
        %898 = vmatpush1.msra.mxu0 0.0
        %899 = vmatprep.subr.mxu0 0.0
        %900 = vmatpush1.msra.mxu0 0.0
        %901 = vmatprep.subr.mxu0 0.0
        %902 = vmatpush1.msra.mxu0 0.0
        %903 = vmatprep.subr.mxu0 0.0
        %904 = vmatpush1.msra.mxu0 0.0
        %905 = vmatprep.subr.mxu0 0.0
        %906 = vmatpush1.msra.mxu0 0.0
        %907 = vmatprep.subr.mxu0 0.0
        %908 = vmatpush1.msra.mxu0 0.0
        %909 = vmatprep.subr.mxu0 0.0
        %910 = vmatpush1.msra.mxu0 0.0
        %911 = vmatprep.subr.mxu0 0.0
        %912 = vmatpush1.msra.mxu0 0.0
        %913 = vmatprep.subr.mxu0 0.0
        %914 = vmatpush1.msra.mxu0 0.0
        %915 = vmatprep.subr.mxu0 0.0
        %916 = vmatpush1.msra.mxu0 0.0
        %917 = vmatprep.subr.mxu0 0.0
        %918 = vmatpush1.msra.mxu0 0.0
        %919 = vmatprep.mubr.f32.mxu0 0.0
        %920 = vmatmul.mubr.f32.gmra.mrb[0].mxu0 %v847
        %v921 = vpop.f32.mrb[0].mxu0
        %v922 = vadd.f32 0.0, %v921
        %v923 = vpop.f32.mrb[0].mxu0
        %924 = vmatprep.mubr.f32.mxu0 0.0
        %925 = vmatmul.mubr.f32.gmra.mrb[0].mxu0 %v850
        %v926 = vpop.f32.mrb[0].mxu0
        %v927 = vadd.f32 0.0, %v926
        %v928 = vpop.f32.mrb[0].mxu0
        %929 = vdwg.mxu0
        %v930 = vadd.f32 %v837, %v922
        %v931 = vadd.f32 %v838, %v927
        %v932 = vld [vmem:[#allocation2 + $0x10] sm:$0xff]
        %v933 = vld [vmem:[#allocation2 + $0x18] sm:$0xf]
        %s934 = scalar_lea.vmem %s2, 160
        %v935 = vld [vmem:[%s934] sm:$0xff]
        %v936 = vld [vmem:[%s934 + $0x8] sm:$0xff]
        %v937 = vld [vmem:[%s934 + $0x10] sm:$0xff]
        %v938 = vld [vmem:[%s934 + $0x18] sm:$0xf]
        %v940 = vsel %vm365, %v932, 0
        %v943 = vsel %vm365, %v933, 0
        %v946 = vsel %vm378, %v938, 0
        %948 = vmatprep.subr.mxu0 0.0
        %949 = vmatpush1.msra.mxu0 %v935
        %950 = vmatprep.subr.mxu0 0.0
        %951 = vmatpush1.msra.mxu0 %v936
        %952 = vmatprep.subr.mxu0 0.0
        %953 = vmatpush1.msra.mxu0 %v937
        %954 = vmatprep.subr.mxu0 0.0
        %955 = vmatpush1.msra.mxu0 %v946
        %956 = vmatprep.subr.mxu0 0.0
        %957 = vmatpush1.msra.mxu0 0.0
        %958 = vmatprep.subr.mxu0 0.0
        %959 = vmatpush1.msra.mxu0 0.0
        %960 = vmatprep.subr.mxu0 0.0
        %961 = vmatpush1.msra.mxu0 0.0
        %962 = vmatprep.subr.mxu0 0.0
        %963 = vmatpush1.msra.mxu0 0.0
        %964 = vmatprep.subr.mxu0 0.0
        %965 = vmatpush1.msra.mxu0 0.0
        %966 = vmatprep.subr.mxu0 0.0
        %967 = vmatpush1.msra.mxu0 0.0
        %968 = vmatprep.subr.mxu0 0.0
        %969 = vmatpush1.msra.mxu0 0.0
        %970 = vmatprep.subr.mxu0 0.0
        %971 = vmatpush1.msra.mxu0 0.0
        %972 = vmatprep.subr.mxu0 0.0
        %973 = vmatpush1.msra.mxu0 0.0
        %974 = vmatprep.subr.mxu0 0.0
        %975 = vmatpush1.msra.mxu0 0.0
        %976 = vmatprep.subr.mxu0 0.0
        %977 = vmatpush1.msra.mxu0 0.0
        %978 = vmatprep.subr.mxu0 0.0
        %979 = vmatpush1.msra.mxu0 0.0
        %980 = vmatprep.subr.mxu0 0.0
        %981 = vmatpush1.msra.mxu0 0.0
        %982 = vmatprep.subr.mxu0 0.0
        %983 = vmatpush1.msra.mxu0 0.0
        %984 = vmatprep.subr.mxu0 0.0
        %985 = vmatpush1.msra.mxu0 0.0
        %986 = vmatprep.subr.mxu0 0.0
        %987 = vmatpush1.msra.mxu0 0.0
        %988 = vmatprep.subr.mxu0 0.0
        %989 = vmatpush1.msra.mxu0 0.0
        %990 = vmatprep.subr.mxu0 0.0
        %991 = vmatpush1.msra.mxu0 0.0
        %992 = vmatprep.subr.mxu0 0.0
        %993 = vmatpush1.msra.mxu0 0.0
        %994 = vmatprep.subr.mxu0 0.0
        %995 = vmatpush1.msra.mxu0 0.0
        %996 = vmatprep.subr.mxu0 0.0
        %997 = vmatpush1.msra.mxu0 0.0
        %998 = vmatprep.subr.mxu0 0.0
        %999 = vmatpush1.msra.mxu0 0.0
        %1000 = vmatprep.subr.mxu0 0.0
        %1001 = vmatpush1.msra.mxu0 0.0
        %1002 = vmatprep.subr.mxu0 0.0
        %1003 = vmatpush1.msra.mxu0 0.0
        %1004 = vmatprep.subr.mxu0 0.0
        %1005 = vmatpush1.msra.mxu0 0.0
        %1006 = vmatprep.subr.mxu0 0.0
        %1007 = vmatpush1.msra.mxu0 0.0
        %1008 = vmatprep.subr.mxu0 0.0
        %1009 = vmatpush1.msra.mxu0 0.0
        %1010 = vmatprep.subr.mxu0 0.0
        %1011 = vmatpush1.msra.mxu0 0.0
        %1012 = vmatprep.mubr.f32.mxu0 0.0
        %1013 = vmatmul.mubr.f32.gmra.mrb[0].mxu0 %v940
        %v1014 = vpop.f32.mrb[0].mxu0
        %v1015 = vadd.f32 0.0, %v1014
        %v1016 = vpop.f32.mrb[0].mxu0
        %1017 = vmatprep.mubr.f32.mxu0 0.0
        %1018 = vmatmul.mubr.f32.gmra.mrb[0].mxu0 %v943
        %v1019 = vpop.f32.mrb[0].mxu0
        %v1020 = vadd.f32 0.0, %v1019
        %v1021 = vpop.f32.mrb[0].mxu0
        %1022 = vdwg.mxu0
        %v1023 = vadd.f32 %v930, %v1015
        %v1024 = vadd.f32 %v931, %v1020
        %v1025 = vld [vmem:[%s3] sm:$0x1]
        %v1027 = vlaneseq
        %v1028 = vshrl.u32 %v1027, 7
        %v1029 = vsub.s32 0, %v1028
        %v1030 = vrot.slane %v1025, %v1029
        %v1032 = vadd.f32 %v1023, %v1030
        %v1033 = vadd.f32 %v1024, %v1030
        %v1034 = vmax.f32 %v1032, 0.0
        %v1035 = vmax.f32 %v1033, 0.0
        %vm1036 = vcmask 982016
        %1037 = vst.msk [vmem:[#allocation3] sm:$0xff] %vm1036, %v1034
        %vm1038 = vcmask 977920
        %1039 = vst.msk [vmem:[#allocation3 + $0x8] sm:$0xf] %vm1038, %v1035
        %v1040 = vld [vmem:[#allocation3] sm:$0xff]
        %v1041 = vld [vmem:[%s4] sm:$0xff]
        %v1042 = vld [vmem:[%s4 + $0x8] sm:$0xff]
        %v1043 = vld [vmem:[%s4 + $0x10] sm:$0xff]
        %v1044 = vld [vmem:[%s4 + $0x18] sm:$0xff]
        %v1045 = vld [vmem:[%s4 + $0x20] sm:$0xff]
        %v1046 = vld [vmem:[%s4 + $0x28] sm:$0xff]
        %v1047 = vld [vmem:[%s4 + $0x30] sm:$0xff]
        %v1048 = vld [vmem:[%s4 + $0x38] sm:$0xff]
        %v1049 = vld [vmem:[%s4 + $0x40] sm:$0xff]
        %v1050 = vld [vmem:[%s4 + $0x48] sm:$0xff]
        %v1051 = vld [vmem:[%s4 + $0x50] sm:$0xff]
        %v1052 = vld [vmem:[%s4 + $0x58] sm:$0xff]
        %v1053 = vld [vmem:[%s4 + $0x60] sm:$0xff]
        %v1054 = vld [vmem:[%s4 + $0x68] sm:$0xff]
        %v1055 = vld [vmem:[%s4 + $0x70] sm:$0xff]
        %v1056 = vld [vmem:[%s4 + $0x78] sm:$0xff]
        %v1057 = vld [vmem:[%s4 + $0x80] sm:$0xff]
        %v1058 = vld [vmem:[%s4 + $0x88] sm:$0xff]
        %v1059 = vld [vmem:[%s4 + $0x90] sm:$0xff]
        %v1060 = vld [vmem:[%s4 + $0x98] sm:$0xff]
        %v1061 = vld [vmem:[%s4 + $0xa0] sm:$0xff]
        %v1062 = vld [vmem:[%s4 + $0xa8] sm:$0xff]
        %v1063 = vld [vmem:[%s4 + $0xb0] sm:$0xff]
        %v1064 = vld [vmem:[%s4 + $0xb8] sm:$0xff]
        %v1065 = vld [vmem:[%s4 + $0xc0] sm:$0xff]
        %v1066 = vld [vmem:[%s4 + $0xc8] sm:$0xff]
        %v1067 = vld [vmem:[%s4 + $0xd0] sm:$0xff]
        %v1068 = vld [vmem:[%s4 + $0xd8] sm:$0xff]
        %v1069 = vld [vmem:[%s4 + $0xe0] sm:$0xff]
        %v1070 = vld [vmem:[%s4 + $0xe8] sm:$0xff]
        %v1071 = vld [vmem:[#allocation3 + $0x1] sm:$0xff]
        %s1072 = scalar_lea.vmem %s4, 240
        %v1073 = vld [vmem:[%s1072] sm:$0xff]
        %v1074 = vld [vmem:[%s1072 + $0x8] sm:$0xff]
        %v1075 = vld [vmem:[%s1072 + $0x10] sm:$0xff]
        %v1076 = vld [vmem:[%s1072 + $0x18] sm:$0xff]
        %v1077 = vld [vmem:[%s1072 + $0x20] sm:$0xff]
        %v1078 = vld [vmem:[%s1072 + $0x28] sm:$0xff]
        %v1079 = vld [vmem:[%s1072 + $0x30] sm:$0xff]
        %v1080 = vld [vmem:[%s1072 + $0x38] sm:$0xff]
        %v1081 = vld [vmem:[%s1072 + $0x40] sm:$0xff]
        %v1082 = vld [vmem:[%s1072 + $0x48] sm:$0xff]
        %v1083 = vld [vmem:[%s1072 + $0x50] sm:$0xff]
        %v1084 = vld [vmem:[%s1072 + $0x58] sm:$0xff]
        %v1085 = vld [vmem:[%s1072 + $0x60] sm:$0xff]
        %v1086 = vld [vmem:[%s1072 + $0x68] sm:$0xff]
        %v1087 = vld [vmem:[%s1072 + $0x70] sm:$0xff]
        %v1088 = vld [vmem:[%s1072 + $0x78] sm:$0xff]
        %v1089 = vld [vmem:[%s1072 + $0x80] sm:$0xff]
        %v1090 = vld [vmem:[%s1072 + $0x88] sm:$0xff]
        %v1091 = vld [vmem:[%s1072 + $0x90] sm:$0xff]
        %v1092 = vld [vmem:[%s1072 + $0x98] sm:$0xff]
        %v1093 = vld [vmem:[%s1072 + $0xa0] sm:$0xff]
        %v1094 = vld [vmem:[%s1072 + $0xa8] sm:$0xff]
        %v1095 = vld [vmem:[%s1072 + $0xb0] sm:$0xff]
        %v1096 = vld [vmem:[%s1072 + $0xb8] sm:$0xff]
        %v1097 = vld [vmem:[%s1072 + $0xc0] sm:$0xff]
        %v1098 = vld [vmem:[%s1072 + $0xc8] sm:$0xff]
        %v1099 = vld [vmem:[%s1072 + $0xd0] sm:$0xff]
        %v1100 = vld [vmem:[%s1072 + $0xd8] sm:$0xff]
        %v1101 = vld [vmem:[%s1072 + $0xe0] sm:$0xff]
        %v1102 = vld [vmem:[%s1072 + $0xe8] sm:$0xff]
        %v1104 = vsel %vm1036, %v1071, 0
        %1106 = vmatprep.subr.mxu0 %v1074
        %1107 = vmatpush1.msra.mxu0 %v1073
        %1108 = vmatprep.subr.mxu0 %v1076
        %1109 = vmatpush1.msra.mxu0 %v1075
        %1110 = vmatprep.subr.mxu0 %v1078
        %1111 = vmatpush1.msra.mxu0 %v1077
        %1112 = vmatprep.subr.mxu0 %v1080
        %1113 = vmatpush1.msra.mxu0 %v1079
        %1114 = vmatprep.subr.mxu0 %v1082
        %1115 = vmatpush1.msra.mxu0 %v1081
        %1116 = vmatprep.subr.mxu0 %v1084
        %1117 = vmatpush1.msra.mxu0 %v1083
        %1118 = vmatprep.subr.mxu0 %v1086
        %1119 = vmatpush1.msra.mxu0 %v1085
        %1120 = vmatprep.subr.mxu0 %v1088
        %1121 = vmatpush1.msra.mxu0 %v1087
        %1122 = vmatprep.subr.mxu0 %v1090
        %1123 = vmatpush1.msra.mxu0 %v1089
        %1124 = vmatprep.subr.mxu0 %v1092
        %1125 = vmatpush1.msra.mxu0 %v1091
        %1126 = vmatprep.subr.mxu0 %v1094
        %1127 = vmatpush1.msra.mxu0 %v1093
        %1128 = vmatprep.subr.mxu0 %v1096
        %1129 = vmatpush1.msra.mxu0 %v1095
        %1130 = vmatprep.subr.mxu0 %v1098
        %1131 = vmatpush1.msra.mxu0 %v1097
        %1132 = vmatprep.subr.mxu0 %v1100
        %1133 = vmatpush1.msra.mxu0 %v1099
        %1134 = vmatprep.subr.mxu0 %v1102
        %1135 = vmatpush1.msra.mxu0 %v1101
        %1136 = vmatprep.subr.mxu0 0.0
        %1137 = vmatpush1.msra.mxu0 0.0
        %1138 = vmatprep.subr.mxu0 0.0
        %1139 = vmatpush1.msra.mxu0 0.0
        %1140 = vmatprep.subr.mxu0 0.0
        %1141 = vmatpush1.msra.mxu0 0.0
        %1142 = vmatprep.subr.mxu0 0.0
        %1143 = vmatpush1.msra.mxu0 0.0
        %1144 = vmatprep.subr.mxu0 0.0
        %1145 = vmatpush1.msra.mxu0 0.0
        %1146 = vmatprep.subr.mxu0 0.0
        %1147 = vmatpush1.msra.mxu0 0.0
        %1148 = vmatprep.subr.mxu0 0.0
        %1149 = vmatpush1.msra.mxu0 0.0
        %1150 = vmatprep.subr.mxu0 0.0
        %1151 = vmatpush1.msra.mxu0 0.0
        %1152 = vmatprep.subr.mxu0 0.0
        %1153 = vmatpush1.msra.mxu0 0.0
        %1154 = vmatprep.subr.mxu0 0.0
        %1155 = vmatpush1.msra.mxu0 0.0
        %1156 = vmatprep.subr.mxu0 0.0
        %1157 = vmatpush1.msra.mxu0 0.0
        %1158 = vmatprep.subr.mxu0 0.0
        %1159 = vmatpush1.msra.mxu0 0.0
        %1160 = vmatprep.subr.mxu0 0.0
        %1161 = vmatpush1.msra.mxu0 0.0
        %1162 = vmatprep.subr.mxu0 0.0
        %1163 = vmatpush1.msra.mxu0 0.0
        %1164 = vmatprep.subr.mxu0 0.0
        %1165 = vmatpush1.msra.mxu0 0.0
        %1166 = vmatprep.subr.mxu0 0.0
        %1167 = vmatpush1.msra.mxu0 0.0
        %1168 = vmatprep.subr.mxu0 0.0
        %1169 = vmatpush1.msra.mxu0 0.0
        %1170 = vmatprep.mubr.f32.mxu0 0.0
        %1171 = vmatmul.mubr.f32.gmra.mrb[0].mxu0 %v1104
        %v1172 = vpop.f32.mrb[0].mxu0
        %v1173 = vadd.f32 0.0, %v1172
        %v1174 = vpop.f32.mrb[0].mxu0
        %v1175 = vadd.f32 0.0, %v1174
        %1176 = vdwg.mxu0
        %v1178 = vsel %vm1036, %v1040, 0
        %1180 = vmatprep.subr.mxu0 %v1042
        %1181 = vmatpush1.msra.mxu0 %v1041
        %1182 = vmatprep.subr.mxu0 %v1044
        %1183 = vmatpush1.msra.mxu0 %v1043
        %1184 = vmatprep.subr.mxu0 %v1046
        %1185 = vmatpush1.msra.mxu0 %v1045
        %1186 = vmatprep.subr.mxu0 %v1048
        %1187 = vmatpush1.msra.mxu0 %v1047
        %1188 = vmatprep.subr.mxu0 %v1050
        %1189 = vmatpush1.msra.mxu0 %v1049
        %1190 = vmatprep.subr.mxu0 %v1052
        %1191 = vmatpush1.msra.mxu0 %v1051
        %1192 = vmatprep.subr.mxu0 %v1054
        %1193 = vmatpush1.msra.mxu0 %v1053
        %1194 = vmatprep.subr.mxu0 %v1056
        %1195 = vmatpush1.msra.mxu0 %v1055
        %1196 = vmatprep.subr.mxu0 %v1058
        %1197 = vmatpush1.msra.mxu0 %v1057
        %1198 = vmatprep.subr.mxu0 %v1060
        %1199 = vmatpush1.msra.mxu0 %v1059
        %1200 = vmatprep.subr.mxu0 %v1062
        %1201 = vmatpush1.msra.mxu0 %v1061
        %1202 = vmatprep.subr.mxu0 %v1064
        %1203 = vmatpush1.msra.mxu0 %v1063
        %1204 = vmatprep.subr.mxu0 %v1066
        %1205 = vmatpush1.msra.mxu0 %v1065
        %1206 = vmatprep.subr.mxu0 %v1068
        %1207 = vmatpush1.msra.mxu0 %v1067
        %1208 = vmatprep.subr.mxu0 %v1070
        %1209 = vmatpush1.msra.mxu0 %v1069
        %1210 = vmatprep.subr.mxu0 0.0
        %1211 = vmatpush1.msra.mxu0 0.0
        %1212 = vmatprep.subr.mxu0 0.0
        %1213 = vmatpush1.msra.mxu0 0.0
        %1214 = vmatprep.subr.mxu0 0.0
        %1215 = vmatpush1.msra.mxu0 0.0
        %1216 = vmatprep.subr.mxu0 0.0
        %1217 = vmatpush1.msra.mxu0 0.0
        %1218 = vmatprep.subr.mxu0 0.0
        %1219 = vmatpush1.msra.mxu0 0.0
        %1220 = vmatprep.subr.mxu0 0.0
        %1221 = vmatpush1.msra.mxu0 0.0
        %1222 = vmatprep.subr.mxu0 0.0
        %1223 = vmatpush1.msra.mxu0 0.0
        %1224 = vmatprep.subr.mxu0 0.0
        %1225 = vmatpush1.msra.mxu0 0.0
        %1226 = vmatprep.subr.mxu0 0.0
        %1227 = vmatpush1.msra.mxu0 0.0
        %1228 = vmatprep.subr.mxu0 0.0
        %1229 = vmatpush1.msra.mxu0 0.0
        %1230 = vmatprep.subr.mxu0 0.0
        %1231 = vmatpush1.msra.mxu0 0.0
        %1232 = vmatprep.subr.mxu0 0.0
        %1233 = vmatpush1.msra.mxu0 0.0
        %1234 = vmatprep.subr.mxu0 0.0
        %1235 = vmatpush1.msra.mxu0 0.0
        %1236 = vmatprep.subr.mxu0 0.0
        %1237 = vmatpush1.msra.mxu0 0.0
        %1238 = vmatprep.subr.mxu0 0.0
        %1239 = vmatpush1.msra.mxu0 0.0
        %1240 = vmatprep.subr.mxu0 0.0
        %1241 = vmatpush1.msra.mxu0 0.0
        %1242 = vmatprep.subr.mxu0 0.0
        %1243 = vmatpush1.msra.mxu0 0.0
        %1244 = vmatprep.mubr.f32.mxu0 0.0
        %1245 = vmatmul.mubr.f32.gmra.mrb[0].mxu0 %v1178
        %v1246 = vpop.f32.mrb[0].mxu0
        %v1247 = vadd.f32 %v1173, %v1246
        %v1248 = vpop.f32.mrb[0].mxu0
        %v1249 = vadd.f32 %v1175, %v1248
        %1250 = vdwg.mxu0
        %v1251 = vld [vmem:[#allocation3 + $0x2] sm:$0xff]
        %s1252 = scalar_lea.vmem %s4, 480
        %v1253 = vld [vmem:[%s1252] sm:$0xff]
        %v1254 = vld [vmem:[%s1252 + $0x8] sm:$0xff]
        %v1255 = vld [vmem:[%s1252 + $0x10] sm:$0xff]
        %v1256 = vld [vmem:[%s1252 + $0x18] sm:$0xff]
        %v1257 = vld [vmem:[%s1252 + $0x20] sm:$0xff]
        %v1258 = vld [vmem:[%s1252 + $0x28] sm:$0xff]
        %v1259 = vld [vmem:[%s1252 + $0x30] sm:$0xff]
        %v1260 = vld [vmem:[%s1252 + $0x38] sm:$0xff]
        %v1261 = vld [vmem:[%s1252 + $0x40] sm:$0xff]
        %v1262 = vld [vmem:[%s1252 + $0x48] sm:$0xff]
        %v1263 = vld [vmem:[%s1252 + $0x50] sm:$0xff]
        %v1264 = vld [vmem:[%s1252 + $0x58] sm:$0xff]
        %v1265 = vld [vmem:[%s1252 + $0x60] sm:$0xff]
        %v1266 = vld [vmem:[%s1252 + $0x68] sm:$0xff]
        %v1267 = vld [vmem:[%s1252 + $0x70] sm:$0xff]
        %v1268 = vld [vmem:[%s1252 + $0x78] sm:$0xff]
        %v1269 = vld [vmem:[%s1252 + $0x80] sm:$0xff]
        %v1270 = vld [vmem:[%s1252 + $0x88] sm:$0xff]
        %v1271 = vld [vmem:[%s1252 + $0x90] sm:$0xff]
        %v1272 = vld [vmem:[%s1252 + $0x98] sm:$0xff]
        %v1273 = vld [vmem:[%s1252 + $0xa0] sm:$0xff]
        %v1274 = vld [vmem:[%s1252 + $0xa8] sm:$0xff]
        %v1275 = vld [vmem:[%s1252 + $0xb0] sm:$0xff]
        %v1276 = vld [vmem:[%s1252 + $0xb8] sm:$0xff]
        %v1277 = vld [vmem:[%s1252 + $0xc0] sm:$0xff]
        %v1278 = vld [vmem:[%s1252 + $0xc8] sm:$0xff]
        %v1279 = vld [vmem:[%s1252 + $0xd0] sm:$0xff]
        %v1280 = vld [vmem:[%s1252 + $0xd8] sm:$0xff]
        %v1281 = vld [vmem:[%s1252 + $0xe0] sm:$0xff]
        %v1282 = vld [vmem:[%s1252 + $0xe8] sm:$0xff]
        %v1284 = vsel %vm1036, %v1251, 0
        %1286 = vmatprep.subr.mxu0 %v1254
        %1287 = vmatpush1.msra.mxu0 %v1253
        %1288 = vmatprep.subr.mxu0 %v1256
        %1289 = vmatpush1.msra.mxu0 %v1255
        %1290 = vmatprep.subr.mxu0 %v1258
        %1291 = vmatpush1.msra.mxu0 %v1257
        %1292 = vmatprep.subr.mxu0 %v1260
        %1293 = vmatpush1.msra.mxu0 %v1259
        %1294 = vmatprep.subr.mxu0 %v1262
        %1295 = vmatpush1.msra.mxu0 %v1261
        %1296 = vmatprep.subr.mxu0 %v1264
        %1297 = vmatpush1.msra.mxu0 %v1263
        %1298 = vmatprep.subr.mxu0 %v1266
        %1299 = vmatpush1.msra.mxu0 %v1265
        %1300 = vmatprep.subr.mxu0 %v1268
        %1301 = vmatpush1.msra.mxu0 %v1267
        %1302 = vmatprep.subr.mxu0 %v1270
        %1303 = vmatpush1.msra.mxu0 %v1269
        %1304 = vmatprep.subr.mxu0 %v1272
        %1305 = vmatpush1.msra.mxu0 %v1271
        %1306 = vmatprep.subr.mxu0 %v1274
        %1307 = vmatpush1.msra.mxu0 %v1273
        %1308 = vmatprep.subr.mxu0 %v1276
        %1309 = vmatpush1.msra.mxu0 %v1275
        %1310 = vmatprep.subr.mxu0 %v1278
        %1311 = vmatpush1.msra.mxu0 %v1277
        %1312 = vmatprep.subr.mxu0 %v1280
        %1313 = vmatpush1.msra.mxu0 %v1279
        %1314 = vmatprep.subr.mxu0 %v1282
        %1315 = vmatpush1.msra.mxu0 %v1281
        %1316 = vmatprep.subr.mxu0 0.0
        %1317 = vmatpush1.msra.mxu0 0.0
        %1318 = vmatprep.subr.mxu0 0.0
        %1319 = vmatpush1.msra.mxu0 0.0
        %1320 = vmatprep.subr.mxu0 0.0
        %1321 = vmatpush1.msra.mxu0 0.0
        %1322 = vmatprep.subr.mxu0 0.0
        %1323 = vmatpush1.msra.mxu0 0.0
        %1324 = vmatprep.subr.mxu0 0.0
        %1325 = vmatpush1.msra.mxu0 0.0
        %1326 = vmatprep.subr.mxu0 0.0
        %1327 = vmatpush1.msra.mxu0 0.0
        %1328 = vmatprep.subr.mxu0 0.0
        %1329 = vmatpush1.msra.mxu0 0.0
        %1330 = vmatprep.subr.mxu0 0.0
        %1331 = vmatpush1.msra.mxu0 0.0
        %1332 = vmatprep.subr.mxu0 0.0
        %1333 = vmatpush1.msra.mxu0 0.0
        %1334 = vmatprep.subr.mxu0 0.0
        %1335 = vmatpush1.msra.mxu0 0.0
        %1336 = vmatprep.subr.mxu0 0.0
        %1337 = vmatpush1.msra.mxu0 0.0
        %1338 = vmatprep.subr.mxu0 0.0
        %1339 = vmatpush1.msra.mxu0 0.0
        %1340 = vmatprep.subr.mxu0 0.0
        %1341 = vmatpush1.msra.mxu0 0.0
        %1342 = vmatprep.subr.mxu0 0.0
        %1343 = vmatpush1.msra.mxu0 0.0
        %1344 = vmatprep.subr.mxu0 0.0
        %1345 = vmatpush1.msra.mxu0 0.0
        %1346 = vmatprep.subr.mxu0 0.0
        %1347 = vmatpush1.msra.mxu0 0.0
        %1348 = vmatprep.subr.mxu0 0.0
        %1349 = vmatpush1.msra.mxu0 0.0
        %1350 = vmatprep.mubr.f32.mxu0 0.0
        %1351 = vmatmul.mubr.f32.gmra.mrb[0].mxu0 %v1284
        %v1352 = vpop.f32.mrb[0].mxu0
        %v1353 = vadd.f32 0.0, %v1352
        %v1354 = vpop.f32.mrb[0].mxu0
        %v1355 = vadd.f32 0.0, %v1354
        %1356 = vdwg.mxu0
        %v1357 = vadd.f32 %v1247, %v1353
        %v1358 = vadd.f32 %v1249, %v1355
        %v1359 = vld [vmem:[#allocation3 + $0x3] sm:$0xff]
        %s1360 = scalar_lea.vmem %s4, 720
        %v1361 = vld [vmem:[%s1360] sm:$0xff]
        %v1362 = vld [vmem:[%s1360 + $0x8] sm:$0xff]
        %v1363 = vld [vmem:[%s1360 + $0x10] sm:$0xff]
        %v1364 = vld [vmem:[%s1360 + $0x18] sm:$0xff]
        %v1365 = vld [vmem:[%s1360 + $0x20] sm:$0xff]
        %v1366 = vld [vmem:[%s1360 + $0x28] sm:$0xff]
        %v1367 = vld [vmem:[%s1360 + $0x30] sm:$0xff]
        %v1368 = vld [vmem:[%s1360 + $0x38] sm:$0xff]
        %v1369 = vld [vmem:[%s1360 + $0x40] sm:$0xff]
        %v1370 = vld [vmem:[%s1360 + $0x48] sm:$0xff]
        %v1371 = vld [vmem:[%s1360 + $0x50] sm:$0xff]
        %v1372 = vld [vmem:[%s1360 + $0x58] sm:$0xff]
        %v1373 = vld [vmem:[%s1360 + $0x60] sm:$0xff]
        %v1374 = vld [vmem:[%s1360 + $0x68] sm:$0xff]
        %v1375 = vld [vmem:[%s1360 + $0x70] sm:$0xff]
        %v1376 = vld [vmem:[%s1360 + $0x78] sm:$0xff]
        %v1377 = vld [vmem:[%s1360 + $0x80] sm:$0xff]
        %v1378 = vld [vmem:[%s1360 + $0x88] sm:$0xff]
        %v1379 = vld [vmem:[%s1360 + $0x90] sm:$0xff]
        %v1380 = vld [vmem:[%s1360 + $0x98] sm:$0xff]
        %v1381 = vld [vmem:[%s1360 + $0xa0] sm:$0xff]
        %v1382 = vld [vmem:[%s1360 + $0xa8] sm:$0xff]
        %v1383 = vld [vmem:[%s1360 + $0xb0] sm:$0xff]
        %v1384 = vld [vmem:[%s1360 + $0xb8] sm:$0xff]
        %v1385 = vld [vmem:[%s1360 + $0xc0] sm:$0xff]
        %v1386 = vld [vmem:[%s1360 + $0xc8] sm:$0xff]
        %v1387 = vld [vmem:[%s1360 + $0xd0] sm:$0xff]
        %v1388 = vld [vmem:[%s1360 + $0xd8] sm:$0xff]
        %v1389 = vld [vmem:[%s1360 + $0xe0] sm:$0xff]
        %v1390 = vld [vmem:[%s1360 + $0xe8] sm:$0xff]
        %v1392 = vsel %vm1036, %v1359, 0
        %1394 = vmatprep.subr.mxu0 %v1362
        %1395 = vmatpush1.msra.mxu0 %v1361
        %1396 = vmatprep.subr.mxu0 %v1364
        %1397 = vmatpush1.msra.mxu0 %v1363
        %1398 = vmatprep.subr.mxu0 %v1366
        %1399 = vmatpush1.msra.mxu0 %v1365
        %1400 = vmatprep.subr.mxu0 %v1368
        %1401 = vmatpush1.msra.mxu0 %v1367
        %1402 = vmatprep.subr.mxu0 %v1370
        %1403 = vmatpush1.msra.mxu0 %v1369
        %1404 = vmatprep.subr.mxu0 %v1372
        %1405 = vmatpush1.msra.mxu0 %v1371
        %1406 = vmatprep.subr.mxu0 %v1374
        %1407 = vmatpush1.msra.mxu0 %v1373
        %1408 = vmatprep.subr.mxu0 %v1376
        %1409 = vmatpush1.msra.mxu0 %v1375
        %1410 = vmatprep.subr.mxu0 %v1378
        %1411 = vmatpush1.msra.mxu0 %v1377
        %1412 = vmatprep.subr.mxu0 %v1380
        %1413 = vmatpush1.msra.mxu0 %v1379
        %1414 = vmatprep.subr.mxu0 %v1382
        %1415 = vmatpush1.msra.mxu0 %v1381
        %1416 = vmatprep.subr.mxu0 %v1384
        %1417 = vmatpush1.msra.mxu0 %v1383
        %1418 = vmatprep.subr.mxu0 %v1386
        %1419 = vmatpush1.msra.mxu0 %v1385
        %1420 = vmatprep.subr.mxu0 %v1388
        %1421 = vmatpush1.msra.mxu0 %v1387
        %1422 = vmatprep.subr.mxu0 %v1390
        %1423 = vmatpush1.msra.mxu0 %v1389
        %1424 = vmatprep.subr.mxu0 0.0
        %1425 = vmatpush1.msra.mxu0 0.0
        %1426 = vmatprep.subr.mxu0 0.0
        %1427 = vmatpush1.msra.mxu0 0.0
        %1428 = vmatprep.subr.mxu0 0.0
        %1429 = vmatpush1.msra.mxu0 0.0
        %1430 = vmatprep.subr.mxu0 0.0
        %1431 = vmatpush1.msra.mxu0 0.0
        %1432 = vmatprep.subr.mxu0 0.0
        %1433 = vmatpush1.msra.mxu0 0.0
        %1434 = vmatprep.subr.mxu0 0.0
        %1435 = vmatpush1.msra.mxu0 0.0
        %1436 = vmatprep.subr.mxu0 0.0
        %1437 = vmatpush1.msra.mxu0 0.0
        %1438 = vmatprep.subr.mxu0 0.0
        %1439 = vmatpush1.msra.mxu0 0.0
        %1440 = vmatprep.subr.mxu0 0.0
        %1441 = vmatpush1.msra.mxu0 0.0
        %1442 = vmatprep.subr.mxu0 0.0
        %1443 = vmatpush1.msra.mxu0 0.0
        %1444 = vmatprep.subr.mxu0 0.0
        %1445 = vmatpush1.msra.mxu0 0.0
        %1446 = vmatprep.subr.mxu0 0.0
        %1447 = vmatpush1.msra.mxu0 0.0
        %1448 = vmatprep.subr.mxu0 0.0
        %1449 = vmatpush1.msra.mxu0 0.0
        %1450 = vmatprep.subr.mxu0 0.0
        %1451 = vmatpush1.msra.mxu0 0.0
        %1452 = vmatprep.subr.mxu0 0.0
        %1453 = vmatpush1.msra.mxu0 0.0
        %1454 = vmatprep.subr.mxu0 0.0
        %1455 = vmatpush1.msra.mxu0 0.0
        %1456 = vmatprep.subr.mxu0 0.0
        %1457 = vmatpush1.msra.mxu0 0.0
        %1458 = vmatprep.mubr.f32.mxu0 0.0
        %1459 = vmatmul.mubr.f32.gmra.mrb[0].mxu0 %v1392
        %v1460 = vpop.f32.mrb[0].mxu0
        %v1461 = vadd.f32 0.0, %v1460
        %v1462 = vpop.f32.mrb[0].mxu0
        %v1463 = vadd.f32 0.0, %v1462
        %1464 = vdwg.mxu0
        %v1465 = vadd.f32 %v1357, %v1461
        %v1466 = vadd.f32 %v1358, %v1463
        %v1467 = vld [vmem:[#allocation3 + $0x4] sm:$0xff]
        %s1468 = scalar_lea.vmem %s4, 960
        %v1469 = vld [vmem:[%s1468] sm:$0xff]
        %v1470 = vld [vmem:[%s1468 + $0x8] sm:$0xff]
        %v1471 = vld [vmem:[%s1468 + $0x10] sm:$0xff]
        %v1472 = vld [vmem:[%s1468 + $0x18] sm:$0xff]
        %v1473 = vld [vmem:[%s1468 + $0x20] sm:$0xff]
        %v1474 = vld [vmem:[%s1468 + $0x28] sm:$0xff]
        %v1475 = vld [vmem:[%s1468 + $0x30] sm:$0xff]
        %v1476 = vld [vmem:[%s1468 + $0x38] sm:$0xff]
        %v1477 = vld [vmem:[%s1468 + $0x40] sm:$0xff]
        %v1478 = vld [vmem:[%s1468 + $0x48] sm:$0xff]
        %v1479 = vld [vmem:[%s1468 + $0x50] sm:$0xff]
        %v1480 = vld [vmem:[%s1468 + $0x58] sm:$0xff]
        %v1481 = vld [vmem:[%s1468 + $0x60] sm:$0xff]
        %v1482 = vld [vmem:[%s1468 + $0x68] sm:$0xff]
        %v1483 = vld [vmem:[%s1468 + $0x70] sm:$0xff]
        %v1484 = vld [vmem:[%s1468 + $0x78] sm:$0xff]
        %v1485 = vld [vmem:[%s1468 + $0x80] sm:$0xff]
        %v1486 = vld [vmem:[%s1468 + $0x88] sm:$0xff]
        %v1487 = vld [vmem:[%s1468 + $0x90] sm:$0xff]
        %v1488 = vld [vmem:[%s1468 + $0x98] sm:$0xff]
        %v1489 = vld [vmem:[%s1468 + $0xa0] sm:$0xff]
        %v1490 = vld [vmem:[%s1468 + $0xa8] sm:$0xff]
        %v1491 = vld [vmem:[%s1468 + $0xb0] sm:$0xff]
        %v1492 = vld [vmem:[%s1468 + $0xb8] sm:$0xff]
        %v1493 = vld [vmem:[%s1468 + $0xc0] sm:$0xff]
        %v1494 = vld [vmem:[%s1468 + $0xc8] sm:$0xff]
        %v1495 = vld [vmem:[%s1468 + $0xd0] sm:$0xff]
        %v1496 = vld [vmem:[%s1468 + $0xd8] sm:$0xff]
        %v1497 = vld [vmem:[%s1468 + $0xe0] sm:$0xff]
        %v1498 = vld [vmem:[%s1468 + $0xe8] sm:$0xff]
        %v1500 = vsel %vm1036, %v1467, 0
        %1502 = vmatprep.subr.mxu0 %v1470
        %1503 = vmatpush1.msra.mxu0 %v1469
        %1504 = vmatprep.subr.mxu0 %v1472
        %1505 = vmatpush1.msra.mxu0 %v1471
        %1506 = vmatprep.subr.mxu0 %v1474
        %1507 = vmatpush1.msra.mxu0 %v1473
        %1508 = vmatprep.subr.mxu0 %v1476
        %1509 = vmatpush1.msra.mxu0 %v1475
        %1510 = vmatprep.subr.mxu0 %v1478
        %1511 = vmatpush1.msra.mxu0 %v1477
        %1512 = vmatprep.subr.mxu0 %v1480
        %1513 = vmatpush1.msra.mxu0 %v1479
        %1514 = vmatprep.subr.mxu0 %v1482
        %1515 = vmatpush1.msra.mxu0 %v1481
        %1516 = vmatprep.subr.mxu0 %v1484
        %1517 = vmatpush1.msra.mxu0 %v1483
        %1518 = vmatprep.subr.mxu0 %v1486
        %1519 = vmatpush1.msra.mxu0 %v1485
        %1520 = vmatprep.subr.mxu0 %v1488
        %1521 = vmatpush1.msra.mxu0 %v1487
        %1522 = vmatprep.subr.mxu0 %v1490
        %1523 = vmatpush1.msra.mxu0 %v1489
        %1524 = vmatprep.subr.mxu0 %v1492
        %1525 = vmatpush1.msra.mxu0 %v1491
        %1526 = vmatprep.subr.mxu0 %v1494
        %1527 = vmatpush1.msra.mxu0 %v1493
        %1528 = vmatprep.subr.mxu0 %v1496
        %1529 = vmatpush1.msra.mxu0 %v1495
        %1530 = vmatprep.subr.mxu0 %v1498
        %1531 = vmatpush1.msra.mxu0 %v1497
        %1532 = vmatprep.subr.mxu0 0.0
        %1533 = vmatpush1.msra.mxu0 0.0
        %1534 = vmatprep.subr.mxu0 0.0
        %1535 = vmatpush1.msra.mxu0 0.0
        %1536 = vmatprep.subr.mxu0 0.0
        %1537 = vmatpush1.msra.mxu0 0.0
        %1538 = vmatprep.subr.mxu0 0.0
        %1539 = vmatpush1.msra.mxu0 0.0
        %1540 = vmatprep.subr.mxu0 0.0
        %1541 = vmatpush1.msra.mxu0 0.0
        %1542 = vmatprep.subr.mxu0 0.0
        %1543 = vmatpush1.msra.mxu0 0.0
        %1544 = vmatprep.subr.mxu0 0.0
        %1545 = vmatpush1.msra.mxu0 0.0
        %1546 = vmatprep.subr.mxu0 0.0
        %1547 = vmatpush1.msra.mxu0 0.0
        %1548 = vmatprep.subr.mxu0 0.0
        %1549 = vmatpush1.msra.mxu0 0.0
        %1550 = vmatprep.subr.mxu0 0.0
        %1551 = vmatpush1.msra.mxu0 0.0
        %1552 = vmatprep.subr.mxu0 0.0
        %1553 = vmatpush1.msra.mxu0 0.0
        %1554 = vmatprep.subr.mxu0 0.0
        %1555 = vmatpush1.msra.mxu0 0.0
        %1556 = vmatprep.subr.mxu0 0.0
        %1557 = vmatpush1.msra.mxu0 0.0
        %1558 = vmatprep.subr.mxu0 0.0
        %1559 = vmatpush1.msra.mxu0 0.0
        %1560 = vmatprep.subr.mxu0 0.0
        %1561 = vmatpush1.msra.mxu0 0.0
        %1562 = vmatprep.subr.mxu0 0.0
        %1563 = vmatpush1.msra.mxu0 0.0
        %1564 = vmatprep.subr.mxu0 0.0
        %1565 = vmatpush1.msra.mxu0 0.0
        %1566 = vmatprep.mubr.f32.mxu0 0.0
        %1567 = vmatmul.mubr.f32.gmra.mrb[0].mxu0 %v1500
        %v1568 = vpop.f32.mrb[0].mxu0
        %v1569 = vadd.f32 0.0, %v1568
        %v1570 = vpop.f32.mrb[0].mxu0
        %v1571 = vadd.f32 0.0, %v1570
        %1572 = vdwg.mxu0
        %v1573 = vadd.f32 %v1465, %v1569
        %v1574 = vadd.f32 %v1466, %v1571
        %v1575 = vld [vmem:[%s5] sm:$0x3]
        %v1577 = vlaneseq
        %v1578 = vshrl.u32 %v1577, 7
        %v1579 = vsub.s32 0, %v1578
        %v1580 = vrot.slane %v1575, %v1579
        %v1581 = vlaneseq
        %v1582 = vshrl.u32 %v1581, 7
        %v1583 = vsub.s32 1, %v1582
        %v1584 = vrot.slane %v1575, %v1583
        %v1587 = vadd.f32 %v1573, %v1580
        %v1588 = vadd.f32 %v1574, %v1584
        %1589 = vst [vmem:[#allocation4] sm:$0xff] %v1587
        %vm1590 = vcmask 261120
        %1591 = vst.msk [vmem:[#allocation4 + $0x8] sm:$0xff] %vm1590, %v1588
        %v1592 = vld [vmem:[#allocation4] sm:$0xff]
        %v1593 = vld [vmem:[#allocation4 + $0x8] sm:$0xff]
        %1596 = vrot.lane.b32.xlu0 %v1592, 48
        %v1597 = vpop.permute.xlu0 %1596
        %1598 = vrot.lane.b32.xlu0 %v1593, 48
        %v1599 = vpop.permute.xlu0 %1598
        %vm1600 = vcmask 392192
        %v1601 = vsel %vm1600, %v1597, %v1599
        %v1603 = vmax.f32 %v1592, %v1601
        %vm1604 = vcmask 654336
        %1605 = vst.msk [vmem:[#allocation5] sm:$0xff] %vm1604, %v1603
        %v1606 = vld [vmem:[%s7] sm:$0x1]
        %v1607 = vld [vmem:[#allocation5] sm:$0x1]
        %v1608 = vld [vmem:[#allocation5 + $0x1] sm:$0x1]
        %v1609 = vmax.f32 %v1607, %v1608
        %v1610 = vld [vmem:[%s6] sm:$0xff]
        %v1611 = vld [vmem:[%s6 + $0x8] sm:$0xff]
        %v1612 = vld [vmem:[%s6 + $0x10] sm:$0xff]
        %v1613 = vld [vmem:[%s6 + $0x18] sm:$0xff]
        %v1614 = vld [vmem:[%s6 + $0x20] sm:$0xff]
        %v1615 = vld [vmem:[%s6 + $0x28] sm:$0xff]
        %v1616 = vld [vmem:[%s6 + $0x30] sm:$0xff]
        %v1617 = vld [vmem:[%s6 + $0x38] sm:$0xff]
        %v1618 = vld [vmem:[%s6 + $0x40] sm:$0xff]
        %v1619 = vld [vmem:[%s6 + $0x48] sm:$0xff]
        %v1621 = vsel %vm1604, %v1609, 0
        %1623 = vmatprep.subr.mxu0 0.0
        %1624 = vmatpush1.msra.mxu0 %v1610
        %1625 = vmatprep.subr.mxu0 0.0
        %1626 = vmatpush1.msra.mxu0 %v1611
        %1627 = vmatprep.subr.mxu0 0.0
        %1628 = vmatpush1.msra.mxu0 %v1612
        %1629 = vmatprep.subr.mxu0 0.0
        %1630 = vmatpush1.msra.mxu0 %v1613
        %1631 = vmatprep.subr.mxu0 0.0
        %1632 = vmatpush1.msra.mxu0 %v1614
        %1633 = vmatprep.subr.mxu0 0.0
        %1634 = vmatpush1.msra.mxu0 %v1615
        %1635 = vmatprep.subr.mxu0 0.0
        %1636 = vmatpush1.msra.mxu0 %v1616
        %1637 = vmatprep.subr.mxu0 0.0
        %1638 = vmatpush1.msra.mxu0 %v1617
        %1639 = vmatprep.subr.mxu0 0.0
        %1640 = vmatpush1.msra.mxu0 %v1618
        %1641 = vmatprep.subr.mxu0 0.0
        %1642 = vmatpush1.msra.mxu0 %v1619
        %1643 = vmatprep.subr.mxu0 0.0
        %1644 = vmatpush1.msra.mxu0 0.0
        %1645 = vmatprep.subr.mxu0 0.0
        %1646 = vmatpush1.msra.mxu0 0.0
        %1647 = vmatprep.subr.mxu0 0.0
        %1648 = vmatpush1.msra.mxu0 0.0
        %1649 = vmatprep.subr.mxu0 0.0
        %1650 = vmatpush1.msra.mxu0 0.0
        %1651 = vmatprep.subr.mxu0 0.0
        %1652 = vmatpush1.msra.mxu0 0.0
        %1653 = vmatprep.subr.mxu0 0.0
        %1654 = vmatpush1.msra.mxu0 0.0
        %1655 = vmatprep.subr.mxu0 0.0
        %1656 = vmatpush1.msra.mxu0 0.0
        %1657 = vmatprep.subr.mxu0 0.0
        %1658 = vmatpush1.msra.mxu0 0.0
        %1659 = vmatprep.subr.mxu0 0.0
        %1660 = vmatpush1.msra.mxu0 0.0
        %1661 = vmatprep.subr.mxu0 0.0
        %1662 = vmatpush1.msra.mxu0 0.0
        %1663 = vmatprep.subr.mxu0 0.0
        %1664 = vmatpush1.msra.mxu0 0.0
        %1665 = vmatprep.subr.mxu0 0.0
        %1666 = vmatpush1.msra.mxu0 0.0
        %1667 = vmatprep.subr.mxu0 0.0
        %1668 = vmatpush1.msra.mxu0 0.0
        %1669 = vmatprep.subr.mxu0 0.0
        %1670 = vmatpush1.msra.mxu0 0.0
        %1671 = vmatprep.subr.mxu0 0.0
        %1672 = vmatpush1.msra.mxu0 0.0
        %1673 = vmatprep.subr.mxu0 0.0
        %1674 = vmatpush1.msra.mxu0 0.0
        %1675 = vmatprep.subr.mxu0 0.0
        %1676 = vmatpush1.msra.mxu0 0.0
        %1677 = vmatprep.subr.mxu0 0.0
        %1678 = vmatpush1.msra.mxu0 0.0
        %1679 = vmatprep.subr.mxu0 0.0
        %1680 = vmatpush1.msra.mxu0 0.0
        %1681 = vmatprep.subr.mxu0 0.0
        %1682 = vmatpush1.msra.mxu0 0.0
        %1683 = vmatprep.subr.mxu0 0.0
        %1684 = vmatpush1.msra.mxu0 0.0
        %1685 = vmatprep.subr.mxu0 0.0
        %1686 = vmatpush1.msra.mxu0 0.0
        %1687 = vmatprep.mubr.f32.mxu0 0.0
        %1688 = vmatmul.mubr.f32.gmra.mrb[0].mxu0 %v1621
        %v1689 = vpop.f32.mrb[0].mxu0
        %v1690 = vadd.f32 0.0, %v1689
        %v1691 = vpop.f32.mrb[0].mxu0
        %1692 = vdwg.mxu0
        %v1693 = vadd.f32 %v1606, %v1690
        %v1694 = vld [vmem:[#allocation5 + $0x2] sm:$0x1]
        %v1695 = vld [vmem:[#allocation5 + $0x3] sm:$0x1]
        %v1696 = vmax.f32 %v1694, %v1695
        %s1697 = scalar_lea.vmem %s6, 80
        %v1698 = vld [vmem:[%s1697] sm:$0xff]
        %v1699 = vld [vmem:[%s1697 + $0x8] sm:$0xff]
        %v1700 = vld [vmem:[%s1697 + $0x10] sm:$0xff]
        %v1701 = vld [vmem:[%s1697 + $0x18] sm:$0xff]
        %v1702 = vld [vmem:[%s1697 + $0x20] sm:$0xff]
        %v1703 = vld [vmem:[%s1697 + $0x28] sm:$0xff]
        %v1704 = vld [vmem:[%s1697 + $0x30] sm:$0xff]
        %v1705 = vld [vmem:[%s1697 + $0x38] sm:$0xff]
        %v1706 = vld [vmem:[%s1697 + $0x40] sm:$0xff]
        %v1707 = vld [vmem:[%s1697 + $0x48] sm:$0xff]
        %v1709 = vsel %vm1604, %v1696, 0
        %1711 = vmatprep.subr.mxu0 0.0
        %1712 = vmatpush1.msra.mxu0 %v1698
        %1713 = vmatprep.subr.mxu0 0.0
        %1714 = vmatpush1.msra.mxu0 %v1699
        %1715 = vmatprep.subr.mxu0 0.0
        %1716 = vmatpush1.msra.mxu0 %v1700
        %1717 = vmatprep.subr.mxu0 0.0
        %1718 = vmatpush1.msra.mxu0 %v1701
        %1719 = vmatprep.subr.mxu0 0.0
        %1720 = vmatpush1.msra.mxu0 %v1702
        %1721 = vmatprep.subr.mxu0 0.0
        %1722 = vmatpush1.msra.mxu0 %v1703
        %1723 = vmatprep.subr.mxu0 0.0
        %1724 = vmatpush1.msra.mxu0 %v1704
        %1725 = vmatprep.subr.mxu0 0.0
        %1726 = vmatpush1.msra.mxu0 %v1705
        %1727 = vmatprep.subr.mxu0 0.0
        %1728 = vmatpush1.msra.mxu0 %v1706
        %1729 = vmatprep.subr.mxu0 0.0
        %1730 = vmatpush1.msra.mxu0 %v1707
        %1731 = vmatprep.subr.mxu0 0.0
        %1732 = vmatpush1.msra.mxu0 0.0
        %1733 = vmatprep.subr.mxu0 0.0
        %1734 = vmatpush1.msra.mxu0 0.0
        %1735 = vmatprep.subr.mxu0 0.0
        %1736 = vmatpush1.msra.mxu0 0.0
        %1737 = vmatprep.subr.mxu0 0.0
        %1738 = vmatpush1.msra.mxu0 0.0
        %1739 = vmatprep.subr.mxu0 0.0
        %1740 = vmatpush1.msra.mxu0 0.0
        %1741 = vmatprep.subr.mxu0 0.0
        %1742 = vmatpush1.msra.mxu0 0.0
        %1743 = vmatprep.subr.mxu0 0.0
        %1744 = vmatpush1.msra.mxu0 0.0
        %1745 = vmatprep.subr.mxu0 0.0
        %1746 = vmatpush1.msra.mxu0 0.0
        %1747 = vmatprep.subr.mxu0 0.0
        %1748 = vmatpush1.msra.mxu0 0.0
        %1749 = vmatprep.subr.mxu0 0.0
        %1750 = vmatpush1.msra.mxu0 0.0
        %1751 = vmatprep.subr.mxu0 0.0
        %1752 = vmatpush1.msra.mxu0 0.0
        %1753 = vmatprep.subr.mxu0 0.0
        %1754 = vmatpush1.msra.mxu0 0.0
        %1755 = vmatprep.subr.mxu0 0.0
        %1756 = vmatpush1.msra.mxu0 0.0
        %1757 = vmatprep.subr.mxu0 0.0
        %1758 = vmatpush1.msra.mxu0 0.0
        %1759 = vmatprep.subr.mxu0 0.0
        %1760 = vmatpush1.msra.mxu0 0.0
        %1761 = vmatprep.subr.mxu0 0.0
        %1762 = vmatpush1.msra.mxu0 0.0
        %1763 = vmatprep.subr.mxu0 0.0
        %1764 = vmatpush1.msra.mxu0 0.0
        %1765 = vmatprep.subr.mxu0 0.0
        %1766 = vmatpush1.msra.mxu0 0.0
        %1767 = vmatprep.subr.mxu0 0.0
        %1768 = vmatpush1.msra.mxu0 0.0
        %1769 = vmatprep.subr.mxu0 0.0
        %1770 = vmatpush1.msra.mxu0 0.0
        %1771 = vmatprep.subr.mxu0 0.0
        %1772 = vmatpush1.msra.mxu0 0.0
        %1773 = vmatprep.subr.mxu0 0.0
        %1774 = vmatpush1.msra.mxu0 0.0
        %1775 = vmatprep.mubr.f32.mxu0 0.0
        %1776 = vmatmul.mubr.f32.gmra.mrb[0].mxu0 %v1709
        %v1777 = vpop.f32.mrb[0].mxu0
        %v1778 = vadd.f32 0.0, %v1777
        %v1779 = vpop.f32.mrb[0].mxu0
        %1780 = vdwg.mxu0
        %v1781 = vadd.f32 %v1693, %v1778
        %v1782 = vld [vmem:[#allocation5 + $0x4] sm:$0x1]
        %v1783 = vld [vmem:[#allocation5 + $0x5] sm:$0x1]
        %v1784 = vmax.f32 %v1782, %v1783
        %s1785 = scalar_lea.vmem %s6, 160
        %v1786 = vld [vmem:[%s1785] sm:$0xff]
        %v1787 = vld [vmem:[%s1785 + $0x8] sm:$0xff]
        %v1788 = vld [vmem:[%s1785 + $0x10] sm:$0xff]
        %v1789 = vld [vmem:[%s1785 + $0x18] sm:$0xff]
        %v1790 = vld [vmem:[%s1785 + $0x20] sm:$0xff]
        %v1791 = vld [vmem:[%s1785 + $0x28] sm:$0xff]
        %v1792 = vld [vmem:[%s1785 + $0x30] sm:$0xff]
        %v1793 = vld [vmem:[%s1785 + $0x38] sm:$0xff]
        %v1794 = vld [vmem:[%s1785 + $0x40] sm:$0xff]
        %v1795 = vld [vmem:[%s1785 + $0x48] sm:$0xff]
        %v1797 = vsel %vm1604, %v1784, 0
        %1799 = vmatprep.subr.mxu0 0.0
        %1800 = vmatpush1.msra.mxu0 %v1786
        %1801 = vmatprep.subr.mxu0 0.0
        %1802 = vmatpush1.msra.mxu0 %v1787
        %1803 = vmatprep.subr.mxu0 0.0
        %1804 = vmatpush1.msra.mxu0 %v1788
        %1805 = vmatprep.subr.mxu0 0.0
        %1806 = vmatpush1.msra.mxu0 %v1789
        %1807 = vmatprep.subr.mxu0 0.0
        %1808 = vmatpush1.msra.mxu0 %v1790
        %1809 = vmatprep.subr.mxu0 0.0
        %1810 = vmatpush1.msra.mxu0 %v1791
        %1811 = vmatprep.subr.mxu0 0.0
        %1812 = vmatpush1.msra.mxu0 %v1792
        %1813 = vmatprep.subr.mxu0 0.0
        %1814 = vmatpush1.msra.mxu0 %v1793
        %1815 = vmatprep.subr.mxu0 0.0
        %1816 = vmatpush1.msra.mxu0 %v1794
        %1817 = vmatprep.subr.mxu0 0.0
        %1818 = vmatpush1.msra.mxu0 %v1795
        %1819 = vmatprep.subr.mxu0 0.0
        %1820 = vmatpush1.msra.mxu0 0.0
        %1821 = vmatprep.subr.mxu0 0.0
        %1822 = vmatpush1.msra.mxu0 0.0
        %1823 = vmatprep.subr.mxu0 0.0
        %1824 = vmatpush1.msra.mxu0 0.0
        %1825 = vmatprep.subr.mxu0 0.0
        %1826 = vmatpush1.msra.mxu0 0.0
        %1827 = vmatprep.subr.mxu0 0.0
        %1828 = vmatpush1.msra.mxu0 0.0
        %1829 = vmatprep.subr.mxu0 0.0
        %1830 = vmatpush1.msra.mxu0 0.0
        %1831 = vmatprep.subr.mxu0 0.0
        %1832 = vmatpush1.msra.mxu0 0.0
        %1833 = vmatprep.subr.mxu0 0.0
        %1834 = vmatpush1.msra.mxu0 0.0
        %1835 = vmatprep.subr.mxu0 0.0
        %1836 = vmatpush1.msra.mxu0 0.0
        %1837 = vmatprep.subr.mxu0 0.0
        %1838 = vmatpush1.msra.mxu0 0.0
        %1839 = vmatprep.subr.mxu0 0.0
        %1840 = vmatpush1.msra.mxu0 0.0
        %1841 = vmatprep.subr.mxu0 0.0
        %1842 = vmatpush1.msra.mxu0 0.0
        %1843 = vmatprep.subr.mxu0 0.0
        %1844 = vmatpush1.msra.mxu0 0.0
        %1845 = vmatprep.subr.mxu0 0.0
        %1846 = vmatpush1.msra.mxu0 0.0
        %1847 = vmatprep.subr.mxu0 0.0
        %1848 = vmatpush1.msra.mxu0 0.0
        %1849 = vmatprep.subr.mxu0 0.0
        %1850 = vmatpush1.msra.mxu0 0.0
        %1851 = vmatprep.subr.mxu0 0.0
        %1852 = vmatpush1.msra.mxu0 0.0
        %1853 = vmatprep.subr.mxu0 0.0
        %1854 = vmatpush1.msra.mxu0 0.0
        %1855 = vmatprep.subr.mxu0 0.0
        %1856 = vmatpush1.msra.mxu0 0.0
        %1857 = vmatprep.subr.mxu0 0.0
        %1858 = vmatpush1.msra.mxu0 0.0
        %1859 = vmatprep.subr.mxu0 0.0
        %1860 = vmatpush1.msra.mxu0 0.0
        %1861 = vmatprep.subr.mxu0 0.0
        %1862 = vmatpush1.msra.mxu0 0.0
        %1863 = vmatprep.mubr.f32.mxu0 0.0
        %1864 = vmatmul.mubr.f32.gmra.mrb[0].mxu0 %v1797
        %v1865 = vpop.f32.mrb[0].mxu0
        %v1866 = vadd.f32 0.0, %v1865
        %v1867 = vpop.f32.mrb[0].mxu0
        %1868 = vdwg.mxu0
        %v1869 = vadd.f32 %v1781, %v1866
        %v1870 = vld [vmem:[#allocation5 + $0x6] sm:$0x1]
        %v1871 = vld [vmem:[#allocation5 + $0x7] sm:$0x1]
        %v1872 = vmax.f32 %v1870, %v1871
        %s1873 = scalar_lea.vmem %s6, 240
        %v1874 = vld [vmem:[%s1873] sm:$0xff]
        %v1875 = vld [vmem:[%s1873 + $0x8] sm:$0xff]
        %v1876 = vld [vmem:[%s1873 + $0x10] sm:$0xff]
        %v1877 = vld [vmem:[%s1873 + $0x18] sm:$0xff]
        %v1878 = vld [vmem:[%s1873 + $0x20] sm:$0xff]
        %v1879 = vld [vmem:[%s1873 + $0x28] sm:$0xff]
        %v1880 = vld [vmem:[%s1873 + $0x30] sm:$0xff]
        %v1881 = vld [vmem:[%s1873 + $0x38] sm:$0xff]
        %v1882 = vld [vmem:[%s1873 + $0x40] sm:$0xff]
        %v1883 = vld [vmem:[%s1873 + $0x48] sm:$0xff]
        %v1885 = vsel %vm1604, %v1872, 0
        %1887 = vmatprep.subr.mxu0 0.0
        %1888 = vmatpush1.msra.mxu0 %v1874
        %1889 = vmatprep.subr.mxu0 0.0
        %1890 = vmatpush1.msra.mxu0 %v1875
        %1891 = vmatprep.subr.mxu0 0.0
        %1892 = vmatpush1.msra.mxu0 %v1876
        %1893 = vmatprep.subr.mxu0 0.0
        %1894 = vmatpush1.msra.mxu0 %v1877
        %1895 = vmatprep.subr.mxu0 0.0
        %1896 = vmatpush1.msra.mxu0 %v1878
        %1897 = vmatprep.subr.mxu0 0.0
        %1898 = vmatpush1.msra.mxu0 %v1879
        %1899 = vmatprep.subr.mxu0 0.0
        %1900 = vmatpush1.msra.mxu0 %v1880
        %1901 = vmatprep.subr.mxu0 0.0
        %1902 = vmatpush1.msra.mxu0 %v1881
        %1903 = vmatprep.subr.mxu0 0.0
        %1904 = vmatpush1.msra.mxu0 %v1882
        %1905 = vmatprep.subr.mxu0 0.0
        %1906 = vmatpush1.msra.mxu0 %v1883
        %1907 = vmatprep.subr.mxu0 0.0
        %1908 = vmatpush1.msra.mxu0 0.0
        %1909 = vmatprep.subr.mxu0 0.0
        %1910 = vmatpush1.msra.mxu0 0.0
        %1911 = vmatprep.subr.mxu0 0.0
        %1912 = vmatpush1.msra.mxu0 0.0
        %1913 = vmatprep.subr.mxu0 0.0
        %1914 = vmatpush1.msra.mxu0 0.0
        %1915 = vmatprep.subr.mxu0 0.0
        %1916 = vmatpush1.msra.mxu0 0.0
        %1917 = vmatprep.subr.mxu0 0.0
        %1918 = vmatpush1.msra.mxu0 0.0
        %1919 = vmatprep.subr.mxu0 0.0
        %1920 = vmatpush1.msra.mxu0 0.0
        %1921 = vmatprep.subr.mxu0 0.0
        %1922 = vmatpush1.msra.mxu0 0.0
        %1923 = vmatprep.subr.mxu0 0.0
        %1924 = vmatpush1.msra.mxu0 0.0
        %1925 = vmatprep.subr.mxu0 0.0
        %1926 = vmatpush1.msra.mxu0 0.0
        %1927 = vmatprep.subr.mxu0 0.0
        %1928 = vmatpush1.msra.mxu0 0.0
        %1929 = vmatprep.subr.mxu0 0.0
        %1930 = vmatpush1.msra.mxu0 0.0
        %1931 = vmatprep.subr.mxu0 0.0
        %1932 = vmatpush1.msra.mxu0 0.0
        %1933 = vmatprep.subr.mxu0 0.0
        %1934 = vmatpush1.msra.mxu0 0.0
        %1935 = vmatprep.subr.mxu0 0.0
        %1936 = vmatpush1.msra.mxu0 0.0
        %1937 = vmatprep.subr.mxu0 0.0
        %1938 = vmatpush1.msra.mxu0 0.0
        %1939 = vmatprep.subr.mxu0 0.0
        %1940 = vmatpush1.msra.mxu0 0.0
        %1941 = vmatprep.subr.mxu0 0.0
        %1942 = vmatpush1.msra.mxu0 0.0
        %1943 = vmatprep.subr.mxu0 0.0
        %1944 = vmatpush1.msra.mxu0 0.0
        %1945 = vmatprep.subr.mxu0 0.0
        %1946 = vmatpush1.msra.mxu0 0.0
        %1947 = vmatprep.subr.mxu0 0.0
        %1948 = vmatpush1.msra.mxu0 0.0
        %1949 = vmatprep.subr.mxu0 0.0
        %1950 = vmatpush1.msra.mxu0 0.0
        %1951 = vmatprep.mubr.f32.mxu0 0.0
        %1952 = vmatmul.mubr.f32.gmra.mrb[0].mxu0 %v1885
        %v1953 = vpop.f32.mrb[0].mxu0
        %v1954 = vadd.f32 0.0, %v1953
        %v1955 = vpop.f32.mrb[0].mxu0
        %1956 = vdwg.mxu0
        %v1957 = vadd.f32 %v1869, %v1954
        %v1958 = vmax.f32 %v1957, 0.0
        %v1959 = vld [vmem:[%s8] sm:$0xff]
        %v1960 = vld [vmem:[%s8 + $0x8] sm:$0xff]
        %v1961 = vld [vmem:[%s8 + $0x10] sm:$0xff]
        %v1962 = vld [vmem:[%s8 + $0x18] sm:$0xff]
        %v1963 = vld [vmem:[%s8 + $0x20] sm:$0xff]
        %v1964 = vld [vmem:[%s8 + $0x28] sm:$0xff]
        %v1965 = vld [vmem:[%s8 + $0x30] sm:$0x3]
        %v1966 = vld [vmem:[%s9] sm:$0x1]
        %vm1967 = vcmask 408576
        %v1969 = vsel %vm1967, %v1958, 0
        %vm1971 = vcmask 1041408
        %v1973 = vsel %vm1971, %v1965, 0
        %1975 = vmatprep.subr.mxu0 0.0
        %1976 = vmatpush1.msra.mxu0 %v1959
        %1977 = vmatprep.subr.mxu0 0.0
        %1978 = vmatpush1.msra.mxu0 %v1960
        %1979 = vmatprep.subr.mxu0 0.0
        %1980 = vmatpush1.msra.mxu0 %v1961
        %1981 = vmatprep.subr.mxu0 0.0
        %1982 = vmatpush1.msra.mxu0 %v1962
        %1983 = vmatprep.subr.mxu0 0.0
        %1984 = vmatpush1.msra.mxu0 %v1963
        %1985 = vmatprep.subr.mxu0 0.0
        %1986 = vmatpush1.msra.mxu0 %v1964
        %1987 = vmatprep.subr.mxu0 0.0
        %1988 = vmatpush1.msra.mxu0 %v1973
        %1989 = vmatprep.subr.mxu0 0.0
        %1990 = vmatpush1.msra.mxu0 0.0
        %1991 = vmatprep.subr.mxu0 0.0
        %1992 = vmatpush1.msra.mxu0 0.0
        %1993 = vmatprep.subr.mxu0 0.0
        %1994 = vmatpush1.msra.mxu0 0.0
        %1995 = vmatprep.subr.mxu0 0.0
        %1996 = vmatpush1.msra.mxu0 0.0
        %1997 = vmatprep.subr.mxu0 0.0
        %1998 = vmatpush1.msra.mxu0 0.0
        %1999 = vmatprep.subr.mxu0 0.0
        %2000 = vmatpush1.msra.mxu0 0.0
        %2001 = vmatprep.subr.mxu0 0.0
        %2002 = vmatpush1.msra.mxu0 0.0
        %2003 = vmatprep.subr.mxu0 0.0
        %2004 = vmatpush1.msra.mxu0 0.0
        %2005 = vmatprep.subr.mxu0 0.0
        %2006 = vmatpush1.msra.mxu0 0.0
        %2007 = vmatprep.subr.mxu0 0.0
        %2008 = vmatpush1.msra.mxu0 0.0
        %2009 = vmatprep.subr.mxu0 0.0
        %2010 = vmatpush1.msra.mxu0 0.0
        %2011 = vmatprep.subr.mxu0 0.0
        %2012 = vmatpush1.msra.mxu0 0.0
        %2013 = vmatprep.subr.mxu0 0.0
        %2014 = vmatpush1.msra.mxu0 0.0
        %2015 = vmatprep.subr.mxu0 0.0
        %2016 = vmatpush1.msra.mxu0 0.0
        %2017 = vmatprep.subr.mxu0 0.0
        %2018 = vmatpush1.msra.mxu0 0.0
        %2019 = vmatprep.subr.mxu0 0.0
        %2020 = vmatpush1.msra.mxu0 0.0
        %2021 = vmatprep.subr.mxu0 0.0
        %2022 = vmatpush1.msra.mxu0 0.0
        %2023 = vmatprep.subr.mxu0 0.0
        %2024 = vmatpush1.msra.mxu0 0.0
        %2025 = vmatprep.subr.mxu0 0.0
        %2026 = vmatpush1.msra.mxu0 0.0
        %2027 = vmatprep.subr.mxu0 0.0
        %2028 = vmatpush1.msra.mxu0 0.0
        %2029 = vmatprep.subr.mxu0 0.0
        %2030 = vmatpush1.msra.mxu0 0.0
        %2031 = vmatprep.subr.mxu0 0.0
        %2032 = vmatpush1.msra.mxu0 0.0
        %2033 = vmatprep.subr.mxu0 0.0
        %2034 = vmatpush1.msra.mxu0 0.0
        %2035 = vmatprep.subr.mxu0 0.0
        %2036 = vmatpush1.msra.mxu0 0.0
        %2037 = vmatprep.subr.mxu0 0.0
        %2038 = vmatpush1.msra.mxu0 0.0
        %2039 = vmatprep.mubr.f32.mxu0 0.0
        %2040 = vmatmul.mubr.f32.gmra.mrb[0].mxu0 %v1969
        %v2041 = vpop.f32.mrb[0].mxu0
        %v2042 = vadd.f32 %v1966, %v2041
        %v2043 = vpop.f32.mrb[0].mxu0
        %2044 = vdwg.mxu0
        %vm2045 = vcmask 73728
        %2046 = vst.msk [vmem:[%s351] sm:$0x1] %vm2045, %v2042
        %s2047 = sand.u32 %s247, 1
        %s2048 = scalar_lea.sflag [#allocation7], %s2047
        %s2049 = sand.u32 %s247, 1
        %s2050 = scalar_lea.vmem [#allocation6], %s2049
        // Predicated region
        $region61: #{mnist_usps_forward.1} parent=59 // pred_check
          %p2051 = pneg %p257
        $region62: #{mnist_usps_forward.1} parent=59 // pred_check_branch
          %2053 = sbr.rel (%p2051) target = $region64
        $region63: #{mnist_usps_forward.1} parent=59 // pred_region
          %s2055 = ssub.s32 16, 16
          %2056 = vsyncadd %s2048, %s2055
          %s2057 = smul.addr %s24, 16
          %s2058 = scalar_lea.hbm %s10, %s2057
          %s2060 = sshll.u32 %s2050, 4
          %s2061 = int_to_ptr.vmem [resolvable:$true] %s2060
          %2063 = dma.vmem_to_hbm [thread:$0]  %s2061, 16, %s2058, %s2048
        $region64: #{mnist_usps_forward.1} parent=59 // pred_fallthru
          _
      $region60: #{mnist_usps_forward.1} parent=5 // pred_fallthru
        _
      %p2064 = scmp.le.s32.totalorder 2, %s19
      // Predicated region
      $region65: #{mnist_usps_forward.1} parent=5 // pred_check
        %p2065 = pneg %p2064
      $region66: #{mnist_usps_forward.1} parent=5 // pred_check_branch
        %2067 = sbr.rel (%p2065) target = $region68
      $region67: #{mnist_usps_forward.1} parent=5 // pred_region
        %s2068 = ssub.s32 %s19, 2
        // Predicated region
        $region69: #{mnist_usps_forward.1} parent=67 // pred_check
          %p2069 = pneg %p263
        $region70: #{mnist_usps_forward.1} parent=67 // pred_check_branch
          %2071 = sbr.rel (%p2069) target = $region72
        $region71: #{mnist_usps_forward.1} parent=67 // pred_region
          %s2072 = sand.u32 %s248, 1
          %s2073 = scalar_lea.sflag [#allocation7], %s2072
          %s2074 = sand.u32 %s248, 1
          %s2075 = scalar_lea.vmem [#allocation6], %s2074
          %2076 = dma.done %s2073, 16
        $region72: #{mnist_usps_forward.1} parent=67 // pred_fallthru
          _
      $region68: #{mnist_usps_forward.1} parent=5 // pred_fallthru
        _
    $region6: #{mnist_usps_forward.1} parent=1 // loop_footer
      %s23 = sadd.s32 1, %s19
    $region7: #{mnist_usps_forward.1} parent=1 // loop_footer_branch
      %18 = sbr.rel target = $region3
    $region8: #{mnist_usps_forward.1} parent=1 // loop_exit
      _
    %2077 = vsyncpa [#allocation7], 1
    %s2078 = scalar_lea.sflag [#allocation7], 1
    %2079 = vsyncpa %s2078, 1

</llo_original>
